<compile_context>
chip_gen: v6e
topology: v6e:2x2x1
jax: 0.10.0
libtpu: 0.0.40
codegen_flags: <defaults>
</compile_context>

<pallas_src>
import jax
import jax.numpy as jnp
from jax.experimental import pallas as pl
from jax.experimental.pallas import tpu as pltpu

SELU_ALPHA = 1.6732632423543772
SELU_SCALE = 1.0507009873554805


def _selu(x):
    return SELU_SCALE * jnp.where(x > 0, x, SELU_ALPHA * (jnp.exp(x) - 1.0))


def resnet_kernel(x_ref, pk_ref, nk_ref,
                  w1, b1, w2, b2, w3, b3, w4, b4, w5, b5, w6, b6,
                  o_ref, cat_ref):
    """One grid step = TN whole batch samples, M = TN*L positions in the lane dim.

    x_ref:   (1, M)   input block (positions in lanes, samples contiguous)
    pk_ref:  (1, M)   0.0 where the lane is l==0 of its sample, else 1.0
    nk_ref:  (1, M)   0.0 where the lane is l==L-1 of its sample, else 1.0
    w1:      (32, 3)  layer-1 taps, columns = [prev | cur | next]     b1: (32, 1)
    w2..w5:  (32, 96) im2col weights, columns = [prev | cur | next]   b*: (32, 1)
    w6:      (1, 96)                                                  b6: (1, 1)
    o_ref:   (1, M)   output block
    cat_ref: (96, M)  VMEM scratch: sublane-stacked im2col slab, reused by layers 2..6
    """
    x = x_ref[...].astype(jnp.float32)            # (1, M)
    prev_keep = pk_ref[...]                       # (1, M) hoisted boundary masks
    next_keep = nk_ref[...]

    def shift_prev(h):                            # h[:, l-1], zeroed at each sample's l==0
        return jnp.roll(h, 1, axis=1) * prev_keep

    def shift_next(h):                            # h[:, l+1], zeroed at each sample's l==L-1
        return jnp.roll(h, -1, axis=1) * next_keep

    def conv_im2col(h, w_ref, b_ref):
        c = h.shape[0]
        cat_ref[0:c, :] = shift_prev(h)
        cat_ref[c:2 * c, :] = h
        cat_ref[2 * c:3 * c, :] = shift_next(h)
        return jnp.dot(w_ref[...], cat_ref[...],
                       preferred_element_type=jnp.float32) + b_ref[...]

    # ---- layer 1 (Cin=1): VPU broadcast multiply-add, skip the degenerate MXU matmul.
    w1v = w1[...]                                 # (32, 3)
    h = (shift_prev(x) * w1v[:, 0:1]
         + x * w1v[:, 1:2]
         + shift_next(x) * w1v[:, 2:3]
         + b1[...])
    h = jnp.maximum(h, 0.0)                       # relu(conv1) -> (32, M)

    # ---- residual stack: one K=96 MXU matmul per layer.
    res = h
    h = _selu(conv_im2col(h, w2, b2))             # selu(conv2)
    h = _selu(conv_im2col(h, w3, b3) + res)       # selu(conv3 + res1)
    res = h
    h = _selu(conv_im2col(h, w4, b4))             # selu(conv4)
    h = _selu(conv_im2col(h, w5, b5) + res)       # selu(conv5 + res1)
    h = jnp.tanh(conv_im2col(h, w6, b6))          # tanh(conv6) -> (1, M)

    o_ref[...] = h.astype(o_ref.dtype)


def _pick_tn(n, l, max_lanes=2048):
    """Largest divisor TN of n with TN*l <= max_lanes and TN*l % 128 == 0 (or TN == n,
    i.e. full array), preferring >= 2 grid steps so both v7x TensorCores get work."""
    cands = [d for d in range(1, n + 1)
             if n % d == 0 and d * l <= max_lanes
             and ((d * l) % 128 == 0 or d == n)]
    if not cands:
        return n
    multi = [d for d in cands if n // d >= 2]
    return max(multi) if multi else max(cands)


def simple_resnet_pallas(x_ncl, kernel_params, *, max_lanes=2048):
    """x_ncl: (N, 1, L) float32 (PyTorch NCL layout). Returns (N, 1, L)."""
    N, cin, L = x_ncl.shape
    assert cin == 1, "SimpleResNet takes a single input channel"
    dtype = x_ncl.dtype

    # Positions in lanes, samples contiguous: (1, N*L).
    x_flat = x_ncl.reshape(1, N * L)

    tn = _pick_tn(N, L, max_lanes)
    m = tn * L
    grid = (N // tn,)

    # Boundary "keep" masks built once in the wrapper ((lane % L) semantics so rolls
    # never bleed across sample boundaries); every grid step reuses the same block.
    pos = jnp.arange(m, dtype=jnp.int32) % L
    prev_keep = (pos != 0).astype(jnp.float32).reshape(1, m)
    next_keep = (pos != (L - 1)).astype(jnp.float32).reshape(1, m)

    k_hidden = kernel_params[1][0].shape[1]       # 3 * 32 = 96

    x_spec = pl.BlockSpec((1, m), lambda n: (0, n))
    mask_spec = pl.BlockSpec((1, m), lambda n: (0, 0))
    in_specs = [x_spec, mask_spec, mask_spec]
    flat_args = [x_flat, prev_keep, next_keep]
    for w, b in kernel_params:
        in_specs.append(pl.BlockSpec(w.shape, lambda n, _nd=w.ndim: (0,) * _nd))
        in_specs.append(pl.BlockSpec(b.shape, lambda n, _nd=b.ndim: (0,) * _nd))
        flat_args += [w, b]

    out_flat = pl.pallas_call(
        resnet_kernel,
        out_shape=jax.ShapeDtypeStruct((1, N * L), dtype),
        grid=grid,
        in_specs=in_specs,
        out_specs=pl.BlockSpec((1, m), lambda n: (0, n)),
        scratch_shapes=[pltpu.VMEM((k_hidden, m), jnp.float32)],
        compiler_params=pltpu.CompilerParams(
            dimension_semantics=("parallel",)),
    )(*flat_args)

    return out_flat.reshape(N, 1, L)


# ---------------- parameter init (deterministic, PyTorch-shaped) ----------------

def init_params(key):
    """Returns params in PyTorch layout (Cout, Cin, 3)/(Cout,) and in kernel layout:
    im2col weights (Cout, 3*Cin) with columns ordered [tap_prev | tap_cur | tap_next],
    bias (Cout, 1)."""
    layer_dims = [(1, 32), (32, 32), (32, 32), (32, 32), (32, 32), (32, 1)]
    torch_params, kernel_params = [], []
    for (cin, cout) in layer_dims:
        key, kw, kb = jax.random.split(key, 3)
        bound = 1.0 / jnp.sqrt(cin * 3.0)
        w = jax.random.uniform(kw, (cout, cin, 3), jnp.float32, -bound, bound)
        b = jax.random.uniform(kb, (cout,), jnp.float32, -bound, bound)
        torch_params.append((w, b))
        w_cat = jnp.transpose(w, (0, 2, 1)).reshape(cout, 3 * cin)  # (Cout, 3*Cin)
        kernel_params.append((w_cat, b.reshape(cout, 1)))
    return torch_params, kernel_params


# ---------------- pure-JAX reference (PyTorch conv semantics, NCL) ----------------

def _conv1d_ref(x_ncl, w_oik, b):
    y = jax.lax.conv_general_dilated(
        x_ncl, w_oik, window_strides=(1,), padding=[(1, 1)],
        dimension_numbers=("NCH", "OIH", "NCH"))
    return y + b[None, :, None]


def reference_forward(x_ncl, torch_params):
    (w1, b1), (w2, b2), (w3, b3), (w4, b4), (w5, b5), (w6, b6) = torch_params
    x = jax.nn.relu(_conv1d_ref(x_ncl, w1, b1))
    res1 = x
    x = jax.nn.selu(_conv1d_ref(x, w2, b2))
    x = jax.nn.selu(_conv1d_ref(x, w3, b3) + res1)
    res1 = x
    x = jax.nn.selu(_conv1d_ref(x, w4, b4))
    x = jax.nn.selu(_conv1d_ref(x, w5, b5) + res1)
    x = jnp.tanh(_conv1d_ref(x, w6, b6))
    return x


if __name__ == "__main__":
    key = jax.random.PRNGKey(0)
    key, kx = jax.random.split(key)

    N, L = 8, 32
    x_ncl = jax.random.normal(kx, (N, 1, L), jnp.float32)   # PyTorch layout (N, Cin=1, L)

    torch_params, kernel_params = init_params(key)

    out_ncl = simple_resnet_pallas(x_ncl, kernel_params)
    out_ncl = jax.block_until_ready(out_ncl)

    ref_ncl = reference_forward(x_ncl, torch_params)
    assert out_ncl.shape == (N, 1, L)
    max_err = float(jnp.max(jnp.abs(out_ncl - ref_ncl)))
    assert jnp.allclose(out_ncl, ref_ncl, atol=5e-4, rtol=5e-4), max_err

    print("KERNEL_OK")
</pallas_src>

<mosaic_0001>
module attributes {stable_mosaic.version = 11 : i64} {
  func.func @resnet_kernel(%arg0: i32, %arg1: memref<1x128xf32, #tpu.memory_space<vmem>>, %arg2: memref<1x128xf32, #tpu.memory_space<vmem>>, %arg3: memref<1x128xf32, #tpu.memory_space<vmem>>, %arg4: memref<32x3xf32, #tpu.memory_space<vmem>>, %arg5: memref<32x1xf32, #tpu.memory_space<vmem>>, %arg6: memref<32x96xf32, #tpu.memory_space<vmem>>, %arg7: memref<32x1xf32, #tpu.memory_space<vmem>>, %arg8: memref<32x96xf32, #tpu.memory_space<vmem>>, %arg9: memref<32x1xf32, #tpu.memory_space<vmem>>, %arg10: memref<32x96xf32, #tpu.memory_space<vmem>>, %arg11: memref<32x1xf32, #tpu.memory_space<vmem>>, %arg12: memref<32x96xf32, #tpu.memory_space<vmem>>, %arg13: memref<32x1xf32, #tpu.memory_space<vmem>>, %arg14: memref<1x96xf32, #tpu.memory_space<vmem>>, %arg15: memref<1x1xf32, #tpu.memory_space<vmem>>, %arg16: memref<1x128xf32, #tpu.memory_space<vmem>>, %arg17: memref<96x128xf32, #tpu.memory_space<vmem>>) attributes {dimension_semantics = [#tpu.dimension_semantics<parallel>], iteration_bounds = array<i64: 2>, scalar_prefetch = 0 : i64, scratch_operands = 1 : i64, tpu.core_type = #tpu.core_type<tc>, window_params = [{transform_indices = @transform_0, window_bounds = array<i64: 1, 128>}, {pipeline_mode = #tpu.pipeline_mode<synchronous>, transform_indices = @transform_1, window_bounds = array<i64: 1, 128>}, {pipeline_mode = #tpu.pipeline_mode<synchronous>, transform_indices = @transform_2, window_bounds = array<i64: 1, 128>}, {pipeline_mode = #tpu.pipeline_mode<synchronous>, transform_indices = @transform_3, window_bounds = array<i64: 32, 3>}, {pipeline_mode = #tpu.pipeline_mode<synchronous>, transform_indices = @transform_4, window_bounds = array<i64: 32, 1>}, {pipeline_mode = #tpu.pipeline_mode<synchronous>, transform_indices = @transform_5, window_bounds = array<i64: 32, 96>}, {pipeline_mode = #tpu.pipeline_mode<synchronous>, transform_indices = @transform_6, window_bounds = array<i64: 32, 1>}, {pipeline_mode = #tpu.pipeline_mode<synchronous>, transform_indices = @transform_7, window_bounds = array<i64: 32, 96>}, {pipeline_mode = #tpu.pipeline_mode<synchronous>, transform_indices = @transform_8, window_bounds = array<i64: 32, 1>}, {pipeline_mode = #tpu.pipeline_mode<synchronous>, transform_indices = @transform_9, window_bounds = array<i64: 32, 96>}, {pipeline_mode = #tpu.pipeline_mode<synchronous>, transform_indices = @transform_10, window_bounds = array<i64: 32, 1>}, {pipeline_mode = #tpu.pipeline_mode<synchronous>, transform_indices = @transform_11, window_bounds = array<i64: 32, 96>}, {pipeline_mode = #tpu.pipeline_mode<synchronous>, transform_indices = @transform_12, window_bounds = array<i64: 32, 1>}, {pipeline_mode = #tpu.pipeline_mode<synchronous>, transform_indices = @transform_13, window_bounds = array<i64: 1, 96>}, {pipeline_mode = #tpu.pipeline_mode<synchronous>, transform_indices = @transform_14, window_bounds = array<i64: 1, 1>}, {transform_indices = @transform_15, window_bounds = array<i64: 1, 128>}]} {
    %c0 = arith.constant 0 : index
    %c0_0 = arith.constant 0 : index
    %0 = vector.load %arg1[%c0, %c0_0] : memref<1x128xf32, #tpu.memory_space<vmem>>, vector<1x128xf32>
    %c0_1 = arith.constant 0 : index
    %c0_2 = arith.constant 0 : index
    %1 = vector.load %arg2[%c0_1, %c0_2] : memref<1x128xf32, #tpu.memory_space<vmem>>, vector<1x128xf32>
    %c0_3 = arith.constant 0 : index
    %c0_4 = arith.constant 0 : index
    %2 = vector.load %arg3[%c0_3, %c0_4] : memref<1x128xf32, #tpu.memory_space<vmem>>, vector<1x128xf32>
    %c0_5 = arith.constant 0 : index
    %c0_6 = arith.constant 0 : index
    %3 = vector.load %arg4[%c0_5, %c0_6] : memref<32x3xf32, #tpu.memory_space<vmem>>, vector<32x3xf32>
    %4 = vector.extract_strided_slice %0 {offsets = [0, 127], sizes = [1, 1], strides = [1, 1]} : vector<1x128xf32> to vector<1x1xf32>
    %5 = vector.extract_strided_slice %0 {offsets = [0, 0], sizes = [1, 127], strides = [1, 1]} : vector<1x128xf32> to vector<1x127xf32>
    %6 = tpu.concatenate %4, %5 in 1 : vector<1x1xf32>, vector<1x127xf32> -> vector<1x128xf32>
    %7 = arith.mulf %6, %1 : vector<1x128xf32>
    %8 = vector.extract_strided_slice %3 {offsets = [0, 0], sizes = [32, 1], strides = [1, 1]} : vector<32x3xf32> to vector<32x1xf32>
    %9 = vector.broadcast %7 : vector<1x128xf32> to vector<32x128xf32>
    %10 = vector.broadcast %8 : vector<32x1xf32> to vector<32x128xf32>
    %11 = arith.mulf %9, %10 : vector<32x128xf32>
    %12 = vector.extract_strided_slice %3 {offsets = [0, 1], sizes = [32, 1], strides = [1, 1]} : vector<32x3xf32> to vector<32x1xf32>
    %13 = vector.broadcast %0 : vector<1x128xf32> to vector<32x128xf32>
    %14 = vector.broadcast %12 : vector<32x1xf32> to vector<32x128xf32>
    %15 = arith.mulf %13, %14 : vector<32x128xf32>
    %16 = arith.addf %11, %15 : vector<32x128xf32>
    %17 = vector.extract_strided_slice %0 {offsets = [0, 1], sizes = [1, 127], strides = [1, 1]} : vector<1x128xf32> to vector<1x127xf32>
    %18 = vector.extract_strided_slice %0 {offsets = [0, 0], sizes = [1, 1], strides = [1, 1]} : vector<1x128xf32> to vector<1x1xf32>
    %19 = tpu.concatenate %17, %18 in 1 : vector<1x127xf32>, vector<1x1xf32> -> vector<1x128xf32>
    %20 = arith.mulf %19, %2 : vector<1x128xf32>
    %21 = vector.extract_strided_slice %3 {offsets = [0, 2], sizes = [32, 1], strides = [1, 1]} : vector<32x3xf32> to vector<32x1xf32>
    %22 = vector.broadcast %20 : vector<1x128xf32> to vector<32x128xf32>
    %23 = vector.broadcast %21 : vector<32x1xf32> to vector<32x128xf32>
    %24 = arith.mulf %22, %23 : vector<32x128xf32>
    %25 = arith.addf %16, %24 : vector<32x128xf32>
    %c0_7 = arith.constant 0 : index
    %c0_8 = arith.constant 0 : index
    %26 = vector.load %arg5[%c0_7, %c0_8] : memref<32x1xf32, #tpu.memory_space<vmem>>, vector<32x1xf32>
    %27 = vector.broadcast %26 : vector<32x1xf32> to vector<32x128xf32>
    %28 = arith.addf %25, %27 : vector<32x128xf32>
    %cst = arith.constant 0.000000e+00 : f32
    %29 = vector.broadcast %cst : f32 to vector<32x128xf32>
    %30 = arith.maximumf %28, %29 : vector<32x128xf32>
    %31 = vector.extract_strided_slice %30 {offsets = [0, 127], sizes = [32, 1], strides = [1, 1]} : vector<32x128xf32> to vector<32x1xf32>
    %32 = vector.extract_strided_slice %30 {offsets = [0, 0], sizes = [32, 127], strides = [1, 1]} : vector<32x128xf32> to vector<32x127xf32>
    %33 = tpu.concatenate %31, %32 in 1 : vector<32x1xf32>, vector<32x127xf32> -> vector<32x128xf32>
    %34 = vector.broadcast %1 : vector<1x128xf32> to vector<32x128xf32>
    %35 = arith.mulf %33, %34 : vector<32x128xf32>
    %c0_9 = arith.constant 0 : index
    %c0_10 = arith.constant 0 : index
    %36 = vector.load %arg17[%c0_9, %c0_10] : memref<96x128xf32, #tpu.memory_space<vmem>>, vector<32x128xf32>
    tpu.vector_store %arg17[%c0_9, %c0_10], %35 {strides = array<i32>} : memref<96x128xf32, #tpu.memory_space<vmem>>, vector<32x128xf32>,
    %c32 = arith.constant 32 : index
    %c0_11 = arith.constant 0 : index
    %37 = vector.load %arg17[%c32, %c0_11] : memref<96x128xf32, #tpu.memory_space<vmem>>, vector<32x128xf32>
    tpu.vector_store %arg17[%c32, %c0_11], %30 {strides = array<i32>} : memref<96x128xf32, #tpu.memory_space<vmem>>, vector<32x128xf32>,
    %38 = vector.extract_strided_slice %30 {offsets = [0, 1], sizes = [32, 127], strides = [1, 1]} : vector<32x128xf32> to vector<32x127xf32>
    %39 = vector.extract_strided_slice %30 {offsets = [0, 0], sizes = [32, 1], strides = [1, 1]} : vector<32x128xf32> to vector<32x1xf32>
    %40 = tpu.concatenate %38, %39 in 1 : vector<32x127xf32>, vector<32x1xf32> -> vector<32x128xf32>
    %41 = vector.broadcast %2 : vector<1x128xf32> to vector<32x128xf32>
    %42 = arith.mulf %40, %41 : vector<32x128xf32>
    %c64 = arith.constant 64 : index
    %c0_12 = arith.constant 0 : index
    %43 = vector.load %arg17[%c64, %c0_12] : memref<96x128xf32, #tpu.memory_space<vmem>>, vector<32x128xf32>
    tpu.vector_store %arg17[%c64, %c0_12], %42 {strides = array<i32>} : memref<96x128xf32, #tpu.memory_space<vmem>>, vector<32x128xf32>,
    %c0_13 = arith.constant 0 : index
    %c0_14 = arith.constant 0 : index
    %44 = vector.load %arg6[%c0_13, %c0_14] : memref<32x96xf32, #tpu.memory_space<vmem>>, vector<32x96xf32>
    %c0_15 = arith.constant 0 : index
    %c0_16 = arith.constant 0 : index
    %45 = vector.load %arg17[%c0_15, %c0_16] : memref<96x128xf32, #tpu.memory_space<vmem>>, vector<96x128xf32>
    %cst_17 = arith.constant dense<0.000000e+00> : vector<32x128xf32>
    %46 = tpu.matmul %44, %45, %cst_17 {dimension_numbers = #tpu.dot_dimension_numbers<[1], [0], [0], [1], [0, 0, 1, 1], [], []>} : vector<32x96xf32>, vector<96x128xf32>, vector<32x128xf32> -> vector<32x128xf32>
    %c0_18 = arith.constant 0 : index
    %c0_19 = arith.constant 0 : index
    %47 = vector.load %arg7[%c0_18, %c0_19] : memref<32x1xf32, #tpu.memory_space<vmem>>, vector<32x1xf32>
    %48 = vector.broadcast %47 : vector<32x1xf32> to vector<32x128xf32>
    %49 = arith.addf %46, %48 : vector<32x128xf32>
    %cst_20 = arith.constant 0.000000e+00 : f32
    %50 = vector.broadcast %cst_20 : f32 to vector<32x128xf32>
    %51 = arith.cmpf ogt, %49, %50 : vector<32x128xf32>
    %52 = math.exp %49 : vector<32x128xf32>
    %cst_21 = arith.constant 1.000000e+00 : f32
    %53 = vector.broadcast %cst_21 : f32 to vector<32x128xf32>
    %54 = arith.subf %52, %53 : vector<32x128xf32>
    %cst_22 = arith.constant 1.67326319 : f32
    %55 = vector.broadcast %cst_22 : f32 to vector<32x128xf32>
    %56 = arith.mulf %55, %54 : vector<32x128xf32>
    %57 = arith.select %51, %49, %56 : vector<32x128xi1>, vector<32x128xf32>
    %cst_23 = arith.constant 1.05070102 : f32
    %58 = vector.broadcast %cst_23 : f32 to vector<32x128xf32>
    %59 = arith.mulf %58, %57 : vector<32x128xf32>
    %60 = vector.extract_strided_slice %59 {offsets = [0, 127], sizes = [32, 1], strides = [1, 1]} : vector<32x128xf32> to vector<32x1xf32>
    %61 = vector.extract_strided_slice %59 {offsets = [0, 0], sizes = [32, 127], strides = [1, 1]} : vector<32x128xf32> to vector<32x127xf32>
    %62 = tpu.concatenate %60, %61 in 1 : vector<32x1xf32>, vector<32x127xf32> -> vector<32x128xf32>
    %63 = vector.broadcast %1 : vector<1x128xf32> to vector<32x128xf32>
    %64 = arith.mulf %62, %63 : vector<32x128xf32>
    %c0_24 = arith.constant 0 : index
    %c0_25 = arith.constant 0 : index
    %65 = vector.load %arg17[%c0_24, %c0_25] : memref<96x128xf32, #tpu.memory_space<vmem>>, vector<32x128xf32>
    tpu.vector_store %arg17[%c0_24, %c0_25], %64 {strides = array<i32>} : memref<96x128xf32, #tpu.memory_space<vmem>>, vector<32x128xf32>,
    %c32_26 = arith.constant 32 : index
    %c0_27 = arith.constant 0 : index
    %66 = vector.load %arg17[%c32_26, %c0_27] : memref<96x128xf32, #tpu.memory_space<vmem>>, vector<32x128xf32>
    tpu.vector_store %arg17[%c32_26, %c0_27], %59 {strides = array<i32>} : memref<96x128xf32, #tpu.memory_space<vmem>>, vector<32x128xf32>,
    %67 = vector.extract_strided_slice %59 {offsets = [0, 1], sizes = [32, 127], strides = [1, 1]} : vector<32x128xf32> to vector<32x127xf32>
    %68 = vector.extract_strided_slice %59 {offsets = [0, 0], sizes = [32, 1], strides = [1, 1]} : vector<32x128xf32> to vector<32x1xf32>
    %69 = tpu.concatenate %67, %68 in 1 : vector<32x127xf32>, vector<32x1xf32> -> vector<32x128xf32>
    %70 = vector.broadcast %2 : vector<1x128xf32> to vector<32x128xf32>
    %71 = arith.mulf %69, %70 : vector<32x128xf32>
    %c64_28 = arith.constant 64 : index
    %c0_29 = arith.constant 0 : index
    %72 = vector.load %arg17[%c64_28, %c0_29] : memref<96x128xf32, #tpu.memory_space<vmem>>, vector<32x128xf32>
    tpu.vector_store %arg17[%c64_28, %c0_29], %71 {strides = array<i32>} : memref<96x128xf32, #tpu.memory_space<vmem>>, vector<32x128xf32>,
    %c0_30 = arith.constant 0 : index
    %c0_31 = arith.constant 0 : index
    %73 = vector.load %arg8[%c0_30, %c0_31] : memref<32x96xf32, #tpu.memory_space<vmem>>, vector<32x96xf32>
    %c0_32 = arith.constant 0 : index
    %c0_33 = arith.constant 0 : index
    %74 = vector.load %arg17[%c0_32, %c0_33] : memref<96x128xf32, #tpu.memory_space<vmem>>, vector<96x128xf32>
    %cst_34 = arith.constant dense<0.000000e+00> : vector<32x128xf32>
    %75 = tpu.matmul %73, %74, %cst_34 {dimension_numbers = #tpu.dot_dimension_numbers<[1], [0], [0], [1], [0, 0, 1, 1], [], []>} : vector<32x96xf32>, vector<96x128xf32>, vector<32x128xf32> -> vector<32x128xf32>
    %c0_35 = arith.constant 0 : index
    %c0_36 = arith.constant 0 : index
    %76 = vector.load %arg9[%c0_35, %c0_36] : memref<32x1xf32, #tpu.memory_space<vmem>>, vector<32x1xf32>
    %77 = vector.broadcast %76 : vector<32x1xf32> to vector<32x128xf32>
    %78 = arith.addf %75, %77 : vector<32x128xf32>
    %79 = arith.addf %78, %30 : vector<32x128xf32>
    %cst_37 = arith.constant 0.000000e+00 : f32
    %80 = vector.broadcast %cst_37 : f32 to vector<32x128xf32>
    %81 = arith.cmpf ogt, %79, %80 : vector<32x128xf32>
    %82 = math.exp %79 : vector<32x128xf32>
    %cst_38 = arith.constant 1.000000e+00 : f32
    %83 = vector.broadcast %cst_38 : f32 to vector<32x128xf32>
    %84 = arith.subf %82, %83 : vector<32x128xf32>
    %cst_39 = arith.constant 1.67326319 : f32
    %85 = vector.broadcast %cst_39 : f32 to vector<32x128xf32>
    %86 = arith.mulf %85, %84 : vector<32x128xf32>
    %87 = arith.select %81, %79, %86 : vector<32x128xi1>, vector<32x128xf32>
    %cst_40 = arith.constant 1.05070102 : f32
    %88 = vector.broadcast %cst_40 : f32 to vector<32x128xf32>
    %89 = arith.mulf %88, %87 : vector<32x128xf32>
    %90 = vector.extract_strided_slice %89 {offsets = [0, 127], sizes = [32, 1], strides = [1, 1]} : vector<32x128xf32> to vector<32x1xf32>
    %91 = vector.extract_strided_slice %89 {offsets = [0, 0], sizes = [32, 127], strides = [1, 1]} : vector<32x128xf32> to vector<32x127xf32>
    %92 = tpu.concatenate %90, %91 in 1 : vector<32x1xf32>, vector<32x127xf32> -> vector<32x128xf32>
    %93 = vector.broadcast %1 : vector<1x128xf32> to vector<32x128xf32>
    %94 = arith.mulf %92, %93 : vector<32x128xf32>
    %c0_41 = arith.constant 0 : index
    %c0_42 = arith.constant 0 : index
    %95 = vector.load %arg17[%c0_41, %c0_42] : memref<96x128xf32, #tpu.memory_space<vmem>>, vector<32x128xf32>
    tpu.vector_store %arg17[%c0_41, %c0_42], %94 {strides = array<i32>} : memref<96x128xf32, #tpu.memory_space<vmem>>, vector<32x128xf32>,
    %c32_43 = arith.constant 32 : index
    %c0_44 = arith.constant 0 : index
    %96 = vector.load %arg17[%c32_43, %c0_44] : memref<96x128xf32, #tpu.memory_space<vmem>>, vector<32x128xf32>
    tpu.vector_store %arg17[%c32_43, %c0_44], %89 {strides = array<i32>} : memref<96x128xf32, #tpu.memory_space<vmem>>, vector<32x128xf32>,
    %97 = vector.extract_strided_slice %89 {offsets = [0, 1], sizes = [32, 127], strides = [1, 1]} : vector<32x128xf32> to vector<32x127xf32>
    %98 = vector.extract_strided_slice %89 {offsets = [0, 0], sizes = [32, 1], strides = [1, 1]} : vector<32x128xf32> to vector<32x1xf32>
    %99 = tpu.concatenate %97, %98 in 1 : vector<32x127xf32>, vector<32x1xf32> -> vector<32x128xf32>
    %100 = vector.broadcast %2 : vector<1x128xf32> to vector<32x128xf32>
    %101 = arith.mulf %99, %100 : vector<32x128xf32>
    %c64_45 = arith.constant 64 : index
    %c0_46 = arith.constant 0 : index
    %102 = vector.load %arg17[%c64_45, %c0_46] : memref<96x128xf32, #tpu.memory_space<vmem>>, vector<32x128xf32>
    tpu.vector_store %arg17[%c64_45, %c0_46], %101 {strides = array<i32>} : memref<96x128xf32, #tpu.memory_space<vmem>>, vector<32x128xf32>,
    %c0_47 = arith.constant 0 : index
    %c0_48 = arith.constant 0 : index
    %103 = vector.load %arg10[%c0_47, %c0_48] : memref<32x96xf32, #tpu.memory_space<vmem>>, vector<32x96xf32>
    %c0_49 = arith.constant 0 : index
    %c0_50 = arith.constant 0 : index
    %104 = vector.load %arg17[%c0_49, %c0_50] : memref<96x128xf32, #tpu.memory_space<vmem>>, vector<96x128xf32>
    %cst_51 = arith.constant dense<0.000000e+00> : vector<32x128xf32>
    %105 = tpu.matmul %103, %104, %cst_51 {dimension_numbers = #tpu.dot_dimension_numbers<[1], [0], [0], [1], [0, 0, 1, 1], [], []>} : vector<32x96xf32>, vector<96x128xf32>, vector<32x128xf32> -> vector<32x128xf32>
    %c0_52 = arith.constant 0 : index
    %c0_53 = arith.constant 0 : index
    %106 = vector.load %arg11[%c0_52, %c0_53] : memref<32x1xf32, #tpu.memory_space<vmem>>, vector<32x1xf32>
    %107 = vector.broadcast %106 : vector<32x1xf32> to vector<32x128xf32>
    %108 = arith.addf %105, %107 : vector<32x128xf32>
    %cst_54 = arith.constant 0.000000e+00 : f32
    %109 = vector.broadcast %cst_54 : f32 to vector<32x128xf32>
    %110 = arith.cmpf ogt, %108, %109 : vector<32x128xf32>
    %111 = math.exp %108 : vector<32x128xf32>
    %cst_55 = arith.constant 1.000000e+00 : f32
    %112 = vector.broadcast %cst_55 : f32 to vector<32x128xf32>
    %113 = arith.subf %111, %112 : vector<32x128xf32>
    %cst_56 = arith.constant 1.67326319 : f32
    %114 = vector.broadcast %cst_56 : f32 to vector<32x128xf32>
    %115 = arith.mulf %114, %113 : vector<32x128xf32>
    %116 = arith.select %110, %108, %115 : vector<32x128xi1>, vector<32x128xf32>
    %cst_57 = arith.constant 1.05070102 : f32
    %117 = vector.broadcast %cst_57 : f32 to vector<32x128xf32>
    %118 = arith.mulf %117, %116 : vector<32x128xf32>
    %119 = vector.extract_strided_slice %118 {offsets = [0, 127], sizes = [32, 1], strides = [1, 1]} : vector<32x128xf32> to vector<32x1xf32>
    %120 = vector.extract_strided_slice %118 {offsets = [0, 0], sizes = [32, 127], strides = [1, 1]} : vector<32x128xf32> to vector<32x127xf32>
    %121 = tpu.concatenate %119, %120 in 1 : vector<32x1xf32>, vector<32x127xf32> -> vector<32x128xf32>
    %122 = vector.broadcast %1 : vector<1x128xf32> to vector<32x128xf32>
    %123 = arith.mulf %121, %122 : vector<32x128xf32>
    %c0_58 = arith.constant 0 : index
    %c0_59 = arith.constant 0 : index
    %124 = vector.load %arg17[%c0_58, %c0_59] : memref<96x128xf32, #tpu.memory_space<vmem>>, vector<32x128xf32>
    tpu.vector_store %arg17[%c0_58, %c0_59], %123 {strides = array<i32>} : memref<96x128xf32, #tpu.memory_space<vmem>>, vector<32x128xf32>,
    %c32_60 = arith.constant 32 : index
    %c0_61 = arith.constant 0 : index
    %125 = vector.load %arg17[%c32_60, %c0_61] : memref<96x128xf32, #tpu.memory_space<vmem>>, vector<32x128xf32>
    tpu.vector_store %arg17[%c32_60, %c0_61], %118 {strides = array<i32>} : memref<96x128xf32, #tpu.memory_space<vmem>>, vector<32x128xf32>,
    %126 = vector.extract_strided_slice %118 {offsets = [0, 1], sizes = [32, 127], strides = [1, 1]} : vector<32x128xf32> to vector<32x127xf32>
    %127 = vector.extract_strided_slice %118 {offsets = [0, 0], sizes = [32, 1], strides = [1, 1]} : vector<32x128xf32> to vector<32x1xf32>
    %128 = tpu.concatenate %126, %127 in 1 : vector<32x127xf32>, vector<32x1xf32> -> vector<32x128xf32>
    %129 = vector.broadcast %2 : vector<1x128xf32> to vector<32x128xf32>
    %130 = arith.mulf %128, %129 : vector<32x128xf32>
    %c64_62 = arith.constant 64 : index
    %c0_63 = arith.constant 0 : index
    %131 = vector.load %arg17[%c64_62, %c0_63] : memref<96x128xf32, #tpu.memory_space<vmem>>, vector<32x128xf32>
    tpu.vector_store %arg17[%c64_62, %c0_63], %130 {strides = array<i32>} : memref<96x128xf32, #tpu.memory_space<vmem>>, vector<32x128xf32>,
    %c0_64 = arith.constant 0 : index
    %c0_65 = arith.constant 0 : index
    %132 = vector.load %arg12[%c0_64, %c0_65] : memref<32x96xf32, #tpu.memory_space<vmem>>, vector<32x96xf32>
    %c0_66 = arith.constant 0 : index
    %c0_67 = arith.constant 0 : index
    %133 = vector.load %arg17[%c0_66, %c0_67] : memref<96x128xf32, #tpu.memory_space<vmem>>, vector<96x128xf32>
    %cst_68 = arith.constant dense<0.000000e+00> : vector<32x128xf32>
    %134 = tpu.matmul %132, %133, %cst_68 {dimension_numbers = #tpu.dot_dimension_numbers<[1], [0], [0], [1], [0, 0, 1, 1], [], []>} : vector<32x96xf32>, vector<96x128xf32>, vector<32x128xf32> -> vector<32x128xf32>
    %c0_69 = arith.constant 0 : index
    %c0_70 = arith.constant 0 : index
    %135 = vector.load %arg13[%c0_69, %c0_70] : memref<32x1xf32, #tpu.memory_space<vmem>>, vector<32x1xf32>
    %136 = vector.broadcast %135 : vector<32x1xf32> to vector<32x128xf32>
    %137 = arith.addf %134, %136 : vector<32x128xf32>
    %138 = arith.addf %137, %89 : vector<32x128xf32>
    %cst_71 = arith.constant 0.000000e+00 : f32
    %139 = vector.broadcast %cst_71 : f32 to vector<32x128xf32>
    %140 = arith.cmpf ogt, %138, %139 : vector<32x128xf32>
    %141 = math.exp %138 : vector<32x128xf32>
    %cst_72 = arith.constant 1.000000e+00 : f32
    %142 = vector.broadcast %cst_72 : f32 to vector<32x128xf32>
    %143 = arith.subf %141, %142 : vector<32x128xf32>
    %cst_73 = arith.constant 1.67326319 : f32
    %144 = vector.broadcast %cst_73 : f32 to vector<32x128xf32>
    %145 = arith.mulf %144, %143 : vector<32x128xf32>
    %146 = arith.select %140, %138, %145 : vector<32x128xi1>, vector<32x128xf32>
    %cst_74 = arith.constant 1.05070102 : f32
    %147 = vector.broadcast %cst_74 : f32 to vector<32x128xf32>
    %148 = arith.mulf %147, %146 : vector<32x128xf32>
    %149 = vector.extract_strided_slice %148 {offsets = [0, 127], sizes = [32, 1], strides = [1, 1]} : vector<32x128xf32> to vector<32x1xf32>
    %150 = vector.extract_strided_slice %148 {offsets = [0, 0], sizes = [32, 127], strides = [1, 1]} : vector<32x128xf32> to vector<32x127xf32>
    %151 = tpu.concatenate %149, %150 in 1 : vector<32x1xf32>, vector<32x127xf32> -> vector<32x128xf32>
    %152 = vector.broadcast %1 : vector<1x128xf32> to vector<32x128xf32>
    %153 = arith.mulf %151, %152 : vector<32x128xf32>
    %c0_75 = arith.constant 0 : index
    %c0_76 = arith.constant 0 : index
    %154 = vector.load %arg17[%c0_75, %c0_76] : memref<96x128xf32, #tpu.memory_space<vmem>>, vector<32x128xf32>
    tpu.vector_store %arg17[%c0_75, %c0_76], %153 {strides = array<i32>} : memref<96x128xf32, #tpu.memory_space<vmem>>, vector<32x128xf32>,
    %c32_77 = arith.constant 32 : index
    %c0_78 = arith.constant 0 : index
    %155 = vector.load %arg17[%c32_77, %c0_78] : memref<96x128xf32, #tpu.memory_space<vmem>>, vector<32x128xf32>
    tpu.vector_store %arg17[%c32_77, %c0_78], %148 {strides = array<i32>} : memref<96x128xf32, #tpu.memory_space<vmem>>, vector<32x128xf32>,
    %156 = vector.extract_strided_slice %148 {offsets = [0, 1], sizes = [32, 127], strides = [1, 1]} : vector<32x128xf32> to vector<32x127xf32>
    %157 = vector.extract_strided_slice %148 {offsets = [0, 0], sizes = [32, 1], strides = [1, 1]} : vector<32x128xf32> to vector<32x1xf32>
    %158 = tpu.concatenate %156, %157 in 1 : vector<32x127xf32>, vector<32x1xf32> -> vector<32x128xf32>
    %159 = vector.broadcast %2 : vector<1x128xf32> to vector<32x128xf32>
    %160 = arith.mulf %158, %159 : vector<32x128xf32>
    %c64_79 = arith.constant 64 : index
    %c0_80 = arith.constant 0 : index
    %161 = vector.load %arg17[%c64_79, %c0_80] : memref<96x128xf32, #tpu.memory_space<vmem>>, vector<32x128xf32>
    tpu.vector_store %arg17[%c64_79, %c0_80], %160 {strides = array<i32>} : memref<96x128xf32, #tpu.memory_space<vmem>>, vector<32x128xf32>,
    %c0_81 = arith.constant 0 : index
    %c0_82 = arith.constant 0 : index
    %162 = vector.load %arg14[%c0_81, %c0_82] : memref<1x96xf32, #tpu.memory_space<vmem>>, vector<1x96xf32>
    %c0_83 = arith.constant 0 : index
    %c0_84 = arith.constant 0 : index
    %163 = vector.load %arg17[%c0_83, %c0_84] : memref<96x128xf32, #tpu.memory_space<vmem>>, vector<96x128xf32>
    %cst_85 = arith.constant dense<0.000000e+00> : vector<1x128xf32>
    %164 = tpu.matmul %162, %163, %cst_85 {dimension_numbers = #tpu.dot_dimension_numbers<[1], [0], [0], [1], [0, 0, 1, 1], [], []>} : vector<1x96xf32>, vector<96x128xf32>, vector<1x128xf32> -> vector<1x128xf32>
    %c0_86 = arith.constant 0 : index
    %c0_87 = arith.constant 0 : index
    %165 = vector.load %arg15[%c0_86, %c0_87] : memref<1x1xf32, #tpu.memory_space<vmem>>, vector<1x1xf32>
    %166 = vector.broadcast %165 : vector<1x1xf32> to vector<1x128xf32>
    %167 = arith.addf %164, %166 : vector<1x128xf32>
    %168 = math.tanh %167 : vector<1x128xf32>
    %c0_88 = arith.constant 0 : index
    %c0_89 = arith.constant 0 : index
    %169 = vector.load %arg16[%c0_88, %c0_89] : memref<1x128xf32, #tpu.memory_space<vmem>>, vector<1x128xf32>
    tpu.vector_store %arg16[%c0_88, %c0_89], %168 {strides = array<i32>} : memref<1x128xf32, #tpu.memory_space<vmem>>, vector<1x128xf32>,
    return
  }
  func.func @transform_0(%arg0: i32) -> (i32, i32) {
    %c0_i32 = arith.constant 0 : i32
    %c0_i32_0 = arith.constant 0 : i32
    return %c0_i32, %arg0 : i32, i32
  }
  func.func @transform_1(%arg0: i32) -> (i32, i32) {
    %c0_i32 = arith.constant 0 : i32
    %c0_i32_0 = arith.constant 0 : i32
    %c0_i32_1 = arith.constant 0 : i32
    return %c0_i32, %c0_i32_0 : i32, i32
  }
  func.func @transform_2(%arg0: i32) -> (i32, i32) {
    %c0_i32 = arith.constant 0 : i32
    %c0_i32_0 = arith.constant 0 : i32
    %c0_i32_1 = arith.constant 0 : i32
    return %c0_i32, %c0_i32_0 : i32, i32
  }
  func.func @transform_3(%arg0: i32) -> (i32, i32) {
    %c0_i32 = arith.constant 0 : i32
    %c0_i32_0 = arith.constant 0 : i32
    %c0_i32_1 = arith.constant 0 : i32
    return %c0_i32, %c0_i32_0 : i32, i32
  }
  func.func @transform_4(%arg0: i32) -> (i32, i32) {
    %c0_i32 = arith.constant 0 : i32
    %c0_i32_0 = arith.constant 0 : i32
    %c0_i32_1 = arith.constant 0 : i32
    return %c0_i32, %c0_i32_0 : i32, i32
  }
  func.func @transform_5(%arg0: i32) -> (i32, i32) {
    %c0_i32 = arith.constant 0 : i32
    %c0_i32_0 = arith.constant 0 : i32
    %c0_i32_1 = arith.constant 0 : i32
    return %c0_i32, %c0_i32_0 : i32, i32
  }
  func.func @transform_6(%arg0: i32) -> (i32, i32) {
    %c0_i32 = arith.constant 0 : i32
    %c0_i32_0 = arith.constant 0 : i32
    %c0_i32_1 = arith.constant 0 : i32
    return %c0_i32, %c0_i32_0 : i32, i32
  }
  func.func @transform_7(%arg0: i32) -> (i32, i32) {
    %c0_i32 = arith.constant 0 : i32
    %c0_i32_0 = arith.constant 0 : i32
    %c0_i32_1 = arith.constant 0 : i32
    return %c0_i32, %c0_i32_0 : i32, i32
  }
  func.func @transform_8(%arg0: i32) -> (i32, i32) {
    %c0_i32 = arith.constant 0 : i32
    %c0_i32_0 = arith.constant 0 : i32
    %c0_i32_1 = arith.constant 0 : i32
    return %c0_i32, %c0_i32_0 : i32, i32
  }
  func.func @transform_9(%arg0: i32) -> (i32, i32) {
    %c0_i32 = arith.constant 0 : i32
    %c0_i32_0 = arith.constant 0 : i32
    %c0_i32_1 = arith.constant 0 : i32
    return %c0_i32, %c0_i32_0 : i32, i32
  }
  func.func @transform_10(%arg0: i32) -> (i32, i32) {
    %c0_i32 = arith.constant 0 : i32
    %c0_i32_0 = arith.constant 0 : i32
    %c0_i32_1 = arith.constant 0 : i32
    return %c0_i32, %c0_i32_0 : i32, i32
  }
  func.func @transform_11(%arg0: i32) -> (i32, i32) {
    %c0_i32 = arith.constant 0 : i32
    %c0_i32_0 = arith.constant 0 : i32
    %c0_i32_1 = arith.constant 0 : i32
    return %c0_i32, %c0_i32_0 : i32, i32
  }
  func.func @transform_12(%arg0: i32) -> (i32, i32) {
    %c0_i32 = arith.constant 0 : i32
    %c0_i32_0 = arith.constant 0 : i32
    %c0_i32_1 = arith.constant 0 : i32
    return %c0_i32, %c0_i32_0 : i32, i32
  }
  func.func @transform_13(%arg0: i32) -> (i32, i32) {
    %c0_i32 = arith.constant 0 : i32
    %c0_i32_0 = arith.constant 0 : i32
    %c0_i32_1 = arith.constant 0 : i32
    return %c0_i32, %c0_i32_0 : i32, i32
  }
  func.func @transform_14(%arg0: i32) -> (i32, i32) {
    %c0_i32 = arith.constant 0 : i32
    %c0_i32_0 = arith.constant 0 : i32
    %c0_i32_1 = arith.constant 0 : i32
    return %c0_i32, %c0_i32_0 : i32, i32
  }
  func.func @transform_15(%arg0: i32) -> (i32, i32) {
    %c0_i32 = arith.constant 0 : i32
    %c0_i32_0 = arith.constant 0 : i32
    return %c0_i32, %arg0 : i32, i32
  }
}

</mosaic_0001>

<llo_original>
// kernel: tpu_custom_call.1
$region0: #{tpu_custom_call.1}
  #allocation0 [shape = 'u32[]', space=smem, size = 0x4, offset = 0x4, fixed_abs, tag = 'smem constant byte address 0x4 - core index']
  #allocation1 [shape = 'u32[144,128]{1,0:T(1,128)}', space=vmem, size = 0x12000, scoped, tag = 'internal scratch']
  #allocation2 [shape = 'f32[96,128]{1,0:T(8,128)}', space=vmem, size = 0xc000, scoped, tag = 'scratch operand']
  #allocation3 [shape = 'f32[1,1]{1,0:T(1,128)S(1)}', space=vmem, size = 0x200, scoped, tag = 'scoped memory for tpu_custom_call.1']
  %s0 = inlined_call_operand.vmem [shape: f32[1,256], index: 0, kind: input, shape index: {}]
  %s1 = inlined_call_operand.vmem [shape: f32[1,128], index: 1, kind: input, shape index: {}]
  %s2 = inlined_call_operand.vmem [shape: f32[1,128], index: 2, kind: input, shape index: {}]
  %s3 = inlined_call_operand.vmem [shape: f32[32,3], index: 3, kind: input, shape index: {}]
  %s4 = inlined_call_operand.vmem [shape: f32[32,1], index: 4, kind: input, shape index: {}]
  %s5 = inlined_call_operand.vmem [shape: f32[32,96], index: 5, kind: input, shape index: {}]
  %s6 = inlined_call_operand.vmem [shape: f32[32,1], index: 6, kind: input, shape index: {}]
  %s7 = inlined_call_operand.vmem [shape: f32[32,96], index: 7, kind: input, shape index: {}]
  %s8 = inlined_call_operand.vmem [shape: f32[32,1], index: 8, kind: input, shape index: {}]
  %s9 = inlined_call_operand.vmem [shape: f32[32,96], index: 9, kind: input, shape index: {}]
  %s10 = inlined_call_operand.vmem [shape: f32[32,1], index: 10, kind: input, shape index: {}]
  %s11 = inlined_call_operand.vmem [shape: f32[32,96], index: 11, kind: input, shape index: {}]
  %s12 = inlined_call_operand.vmem [shape: f32[32,1], index: 12, kind: input, shape index: {}]
  %s13 = inlined_call_operand.vmem [shape: f32[1,96], index: 13, kind: input, shape index: {}]
  %s14 = inlined_call_operand.<no memory space> [shape: f32[1,1], index: 14, kind: input, shape index: {}]
  %s15 = inlined_call_operand.hbm [shape: f32[1,256], index: 15, kind: output, shape index: {}]
  %s16 = sld [smem:[#allocation0]]
  $region93: #{tpu_custom_call.1} parent=0
    _
  %s18 = ssub.s32 1, %s16
  %s19 = scalar_select 0, %s18, %s16
  %v20 = vstv %s14
  %21 = vst [vmem:[#allocation3] sm:$0x1] %v20
  $region1: #{tpu_custom_call.1} parent=0
    #allocation4 [shape = 'u8[1024]{0}', space=vmem, size = 0x400, scoped, tag = 'output window, operand 0']
    #allocation5 [shape = 's32[2]{0}', space=sflag, size = 0x8, scoped, tag = 'scoped memory for tpu_custom_call.1']
    %22 = vsyncpa [#allocation5], 0
    %s23 = scalar_lea.sflag [#allocation5], 1
    %24 = vsyncpa %s23, 0
    loop: start=0, step=1, limit=4
    $region2: #{tpu_custom_call.1} parent=1 // loop_pre_header
      _
    $region3: #{tpu_custom_call.1} parent=1 // loop_header
      %s26 = sphi 0, %s30
      %p27 = scmp.ge.s32.totalorder %s26, 4
      %s36 = sphi 0, %s38
      %s39 = sphi 0, %s36
      %s40 = sphi 0, %s39
      %s56 = sphi 0, %s40
      %s60 = sphi 0, %s60
      %s62 = sphi 0, %s60
      %s63 = sphi 0, %s62
      %s77 = sphi 0, %s63
      %s81 = sphi 0, %s81
      %s83 = sphi 0, %s81
      %s84 = sphi 0, %s83
      %s98 = sphi 0, %s84
      %s102 = sphi 0, %s102
      %s104 = sphi 0, %s102
      %s105 = sphi 0, %s104
      %s119 = sphi 0, %s105
      %s123 = sphi 0, %s123
      %s125 = sphi 0, %s123
      %s126 = sphi 0, %s125
      %s140 = sphi 0, %s126
      %s144 = sphi 0, %s144
      %s146 = sphi 0, %s144
      %s147 = sphi 0, %s146
      %s161 = sphi 0, %s147
      %s165 = sphi 0, %s165
      %s167 = sphi 0, %s165
      %s168 = sphi 0, %s167
      %s182 = sphi 0, %s168
      %s186 = sphi 0, %s186
      %s188 = sphi 0, %s186
      %s189 = sphi 0, %s188
      %s203 = sphi 0, %s189
      %s207 = sphi 0, %s207
      %s209 = sphi 0, %s207
      %s210 = sphi 0, %s209
      %s224 = sphi 0, %s210
      %s228 = sphi 0, %s228
      %s230 = sphi 0, %s228
      %s231 = sphi 0, %s230
      %s245 = sphi 0, %s231
      %s249 = sphi 0, %s249
      %s251 = sphi 0, %s249
      %s252 = sphi 0, %s251
      %s266 = sphi 0, %s252
      %s270 = sphi 0, %s270
      %s272 = sphi 0, %s270
      %s273 = sphi 0, %s272
      %s287 = sphi 0, %s273
      %s291 = sphi 0, %s291
      %s293 = sphi 0, %s291
      %s294 = sphi 0, %s293
      %s308 = sphi 0, %s294
      %s312 = sphi 0, %s312
      %s314 = sphi 0, %s312
      %s315 = sphi 0, %s314
      %s329 = sphi 0, %s315
      %s333 = sphi 0, %s333
      %s335 = sphi 0, %s333
      %s336 = sphi 0, %s335
      %s350 = sphi 0, %s336
      %s356 = sphi 0, %s358
      %s359 = sphi 0, %s356
      %s360 = sphi 0, %s359
      %s376 = sphi 0, %s360
    $region4: #{tpu_custom_call.1} parent=1 // loop_header_branch
      %29 = sbr.rel (%p27) target = $region8
    $region5: #{tpu_custom_call.1} parent=1 // loop_body
      %s31 = ssub.s32 %s26, 1
      %s32 = ssub.s32 %s26, 2
      %s33 = sadd.s32 %s26, 1
      %s34 = ssub.s32 %s26, %s33
      %p35 = scmp.eq.s32.totalorder %s34, 0
      %s37 = sadd.s32 %s36, 1
      %s38 = scalar_select %p35, %s36, %s37
      %p41 = pneg %p35
      %p42 = scmp.eq.s32.totalorder %s26, 1
      %p43 = por %p41, %p42
      %p44 = scmp.ne.s32.totalorder %s36, %s39
      %p45 = scmp.eq.s32.totalorder %s26, 0
      %p46 = por %p44, %p45
      %p47 = scmp.ne.s32.totalorder %s36, %s39
      %p48 = scmp.eq.s32.totalorder %s31, 1
      %p49 = por %p47, %p48
      %p50 = scmp.ne.s32.totalorder %s39, %s40
      %p51 = scmp.eq.s32.totalorder %s31, 0
      %p52 = por %p50, %p51
      %p53 = scmp.ne.s32.totalorder %s39, %s40
      %p54 = scmp.eq.s32.totalorder %s32, 1
      %p55 = por %p53, %p54
      %p57 = scmp.ne.s32.totalorder %s40, %s56
      %p58 = scmp.eq.s32.totalorder %s32, 0
      %p59 = por %p57, %p58
      %s61 = sadd.s32 %s60, 1
      %p64 = scmp.eq.s32.totalorder %s26, 1
      %p65 = scmp.ne.s32.totalorder %s60, %s62
      %p66 = scmp.eq.s32.totalorder %s26, 0
      %p67 = por %p65, %p66
      %p68 = scmp.ne.s32.totalorder %s60, %s62
      %p69 = scmp.eq.s32.totalorder %s31, 1
      %p70 = por %p68, %p69
      %p71 = scmp.ne.s32.totalorder %s62, %s63
      %p72 = scmp.eq.s32.totalorder %s31, 0
      %p73 = por %p71, %p72
      %p74 = scmp.ne.s32.totalorder %s62, %s63
      %p75 = scmp.eq.s32.totalorder %s32, 1
      %p76 = por %p74, %p75
      %p78 = scmp.ne.s32.totalorder %s63, %s77
      %p79 = scmp.eq.s32.totalorder %s32, 0
      %p80 = por %p78, %p79
      %s82 = sadd.s32 %s81, 1
      %p85 = scmp.eq.s32.totalorder %s26, 1
      %p86 = scmp.ne.s32.totalorder %s81, %s83
      %p87 = scmp.eq.s32.totalorder %s26, 0
      %p88 = por %p86, %p87
      %p89 = scmp.ne.s32.totalorder %s81, %s83
      %p90 = scmp.eq.s32.totalorder %s31, 1
      %p91 = por %p89, %p90
      %p92 = scmp.ne.s32.totalorder %s83, %s84
      %p93 = scmp.eq.s32.totalorder %s31, 0
      %p94 = por %p92, %p93
      %p95 = scmp.ne.s32.totalorder %s83, %s84
      %p96 = scmp.eq.s32.totalorder %s32, 1
      %p97 = por %p95, %p96
      %p99 = scmp.ne.s32.totalorder %s84, %s98
      %p100 = scmp.eq.s32.totalorder %s32, 0
      %p101 = por %p99, %p100
      %s103 = sadd.s32 %s102, 1
      %p106 = scmp.eq.s32.totalorder %s26, 1
      %p107 = scmp.ne.s32.totalorder %s102, %s104
      %p108 = scmp.eq.s32.totalorder %s26, 0
      %p109 = por %p107, %p108
      %p110 = scmp.ne.s32.totalorder %s102, %s104
      %p111 = scmp.eq.s32.totalorder %s31, 1
      %p112 = por %p110, %p111
      %p113 = scmp.ne.s32.totalorder %s104, %s105
      %p114 = scmp.eq.s32.totalorder %s31, 0
      %p115 = por %p113, %p114
      %p116 = scmp.ne.s32.totalorder %s104, %s105
      %p117 = scmp.eq.s32.totalorder %s32, 1
      %p118 = por %p116, %p117
      %p120 = scmp.ne.s32.totalorder %s105, %s119
      %p121 = scmp.eq.s32.totalorder %s32, 0
      %p122 = por %p120, %p121
      %s124 = sadd.s32 %s123, 1
      %p127 = scmp.eq.s32.totalorder %s26, 1
      %p128 = scmp.ne.s32.totalorder %s123, %s125
      %p129 = scmp.eq.s32.totalorder %s26, 0
      %p130 = por %p128, %p129
      %p131 = scmp.ne.s32.totalorder %s123, %s125
      %p132 = scmp.eq.s32.totalorder %s31, 1
      %p133 = por %p131, %p132
      %p134 = scmp.ne.s32.totalorder %s125, %s126
      %p135 = scmp.eq.s32.totalorder %s31, 0
      %p136 = por %p134, %p135
      %p137 = scmp.ne.s32.totalorder %s125, %s126
      %p138 = scmp.eq.s32.totalorder %s32, 1
      %p139 = por %p137, %p138
      %p141 = scmp.ne.s32.totalorder %s126, %s140
      %p142 = scmp.eq.s32.totalorder %s32, 0
      %p143 = por %p141, %p142
      %s145 = sadd.s32 %s144, 1
      %p148 = scmp.eq.s32.totalorder %s26, 1
      %p149 = scmp.ne.s32.totalorder %s144, %s146
      %p150 = scmp.eq.s32.totalorder %s26, 0
      %p151 = por %p149, %p150
      %p152 = scmp.ne.s32.totalorder %s144, %s146
      %p153 = scmp.eq.s32.totalorder %s31, 1
      %p154 = por %p152, %p153
      %p155 = scmp.ne.s32.totalorder %s146, %s147
      %p156 = scmp.eq.s32.totalorder %s31, 0
      %p157 = por %p155, %p156
      %p158 = scmp.ne.s32.totalorder %s146, %s147
      %p159 = scmp.eq.s32.totalorder %s32, 1
      %p160 = por %p158, %p159
      %p162 = scmp.ne.s32.totalorder %s147, %s161
      %p163 = scmp.eq.s32.totalorder %s32, 0
      %p164 = por %p162, %p163
      %s166 = sadd.s32 %s165, 1
      %p169 = scmp.eq.s32.totalorder %s26, 1
      %p170 = scmp.ne.s32.totalorder %s165, %s167
      %p171 = scmp.eq.s32.totalorder %s26, 0
      %p172 = por %p170, %p171
      %p173 = scmp.ne.s32.totalorder %s165, %s167
      %p174 = scmp.eq.s32.totalorder %s31, 1
      %p175 = por %p173, %p174
      %p176 = scmp.ne.s32.totalorder %s167, %s168
      %p177 = scmp.eq.s32.totalorder %s31, 0
      %p178 = por %p176, %p177
      %p179 = scmp.ne.s32.totalorder %s167, %s168
      %p180 = scmp.eq.s32.totalorder %s32, 1
      %p181 = por %p179, %p180
      %p183 = scmp.ne.s32.totalorder %s168, %s182
      %p184 = scmp.eq.s32.totalorder %s32, 0
      %p185 = por %p183, %p184
      %s187 = sadd.s32 %s186, 1
      %p190 = scmp.eq.s32.totalorder %s26, 1
      %p191 = scmp.ne.s32.totalorder %s186, %s188
      %p192 = scmp.eq.s32.totalorder %s26, 0
      %p193 = por %p191, %p192
      %p194 = scmp.ne.s32.totalorder %s186, %s188
      %p195 = scmp.eq.s32.totalorder %s31, 1
      %p196 = por %p194, %p195
      %p197 = scmp.ne.s32.totalorder %s188, %s189
      %p198 = scmp.eq.s32.totalorder %s31, 0
      %p199 = por %p197, %p198
      %p200 = scmp.ne.s32.totalorder %s188, %s189
      %p201 = scmp.eq.s32.totalorder %s32, 1
      %p202 = por %p200, %p201
      %p204 = scmp.ne.s32.totalorder %s189, %s203
      %p205 = scmp.eq.s32.totalorder %s32, 0
      %p206 = por %p204, %p205
      %s208 = sadd.s32 %s207, 1
      %p211 = scmp.eq.s32.totalorder %s26, 1
      %p212 = scmp.ne.s32.totalorder %s207, %s209
      %p213 = scmp.eq.s32.totalorder %s26, 0
      %p214 = por %p212, %p213
      %p215 = scmp.ne.s32.totalorder %s207, %s209
      %p216 = scmp.eq.s32.totalorder %s31, 1
      %p217 = por %p215, %p216
      %p218 = scmp.ne.s32.totalorder %s209, %s210
      %p219 = scmp.eq.s32.totalorder %s31, 0
      %p220 = por %p218, %p219
      %p221 = scmp.ne.s32.totalorder %s209, %s210
      %p222 = scmp.eq.s32.totalorder %s32, 1
      %p223 = por %p221, %p222
      %p225 = scmp.ne.s32.totalorder %s210, %s224
      %p226 = scmp.eq.s32.totalorder %s32, 0
      %p227 = por %p225, %p226
      %s229 = sadd.s32 %s228, 1
      %p232 = scmp.eq.s32.totalorder %s26, 1
      %p233 = scmp.ne.s32.totalorder %s228, %s230
      %p234 = scmp.eq.s32.totalorder %s26, 0
      %p235 = por %p233, %p234
      %p236 = scmp.ne.s32.totalorder %s228, %s230
      %p237 = scmp.eq.s32.totalorder %s31, 1
      %p238 = por %p236, %p237
      %p239 = scmp.ne.s32.totalorder %s230, %s231
      %p240 = scmp.eq.s32.totalorder %s31, 0
      %p241 = por %p239, %p240
      %p242 = scmp.ne.s32.totalorder %s230, %s231
      %p243 = scmp.eq.s32.totalorder %s32, 1
      %p244 = por %p242, %p243
      %p246 = scmp.ne.s32.totalorder %s231, %s245
      %p247 = scmp.eq.s32.totalorder %s32, 0
      %p248 = por %p246, %p247
      %s250 = sadd.s32 %s249, 1
      %p253 = scmp.eq.s32.totalorder %s26, 1
      %p254 = scmp.ne.s32.totalorder %s249, %s251
      %p255 = scmp.eq.s32.totalorder %s26, 0
      %p256 = por %p254, %p255
      %p257 = scmp.ne.s32.totalorder %s249, %s251
      %p258 = scmp.eq.s32.totalorder %s31, 1
      %p259 = por %p257, %p258
      %p260 = scmp.ne.s32.totalorder %s251, %s252
      %p261 = scmp.eq.s32.totalorder %s31, 0
      %p262 = por %p260, %p261
      %p263 = scmp.ne.s32.totalorder %s251, %s252
      %p264 = scmp.eq.s32.totalorder %s32, 1
      %p265 = por %p263, %p264
      %p267 = scmp.ne.s32.totalorder %s252, %s266
      %p268 = scmp.eq.s32.totalorder %s32, 0
      %p269 = por %p267, %p268
      %s271 = sadd.s32 %s270, 1
      %p274 = scmp.eq.s32.totalorder %s26, 1
      %p275 = scmp.ne.s32.totalorder %s270, %s272
      %p276 = scmp.eq.s32.totalorder %s26, 0
      %p277 = por %p275, %p276
      %p278 = scmp.ne.s32.totalorder %s270, %s272
      %p279 = scmp.eq.s32.totalorder %s31, 1
      %p280 = por %p278, %p279
      %p281 = scmp.ne.s32.totalorder %s272, %s273
      %p282 = scmp.eq.s32.totalorder %s31, 0
      %p283 = por %p281, %p282
      %p284 = scmp.ne.s32.totalorder %s272, %s273
      %p285 = scmp.eq.s32.totalorder %s32, 1
      %p286 = por %p284, %p285
      %p288 = scmp.ne.s32.totalorder %s273, %s287
      %p289 = scmp.eq.s32.totalorder %s32, 0
      %p290 = por %p288, %p289
      %s292 = sadd.s32 %s291, 1
      %p295 = scmp.eq.s32.totalorder %s26, 1
      %p296 = scmp.ne.s32.totalorder %s291, %s293
      %p297 = scmp.eq.s32.totalorder %s26, 0
      %p298 = por %p296, %p297
      %p299 = scmp.ne.s32.totalorder %s291, %s293
      %p300 = scmp.eq.s32.totalorder %s31, 1
      %p301 = por %p299, %p300
      %p302 = scmp.ne.s32.totalorder %s293, %s294
      %p303 = scmp.eq.s32.totalorder %s31, 0
      %p304 = por %p302, %p303
      %p305 = scmp.ne.s32.totalorder %s293, %s294
      %p306 = scmp.eq.s32.totalorder %s32, 1
      %p307 = por %p305, %p306
      %p309 = scmp.ne.s32.totalorder %s294, %s308
      %p310 = scmp.eq.s32.totalorder %s32, 0
      %p311 = por %p309, %p310
      %s313 = sadd.s32 %s312, 1
      %p316 = scmp.eq.s32.totalorder %s26, 1
      %p317 = scmp.ne.s32.totalorder %s312, %s314
      %p318 = scmp.eq.s32.totalorder %s26, 0
      %p319 = por %p317, %p318
      %p320 = scmp.ne.s32.totalorder %s312, %s314
      %p321 = scmp.eq.s32.totalorder %s31, 1
      %p322 = por %p320, %p321
      %p323 = scmp.ne.s32.totalorder %s314, %s315
      %p324 = scmp.eq.s32.totalorder %s31, 0
      %p325 = por %p323, %p324
      %p326 = scmp.ne.s32.totalorder %s314, %s315
      %p327 = scmp.eq.s32.totalorder %s32, 1
      %p328 = por %p326, %p327
      %p330 = scmp.ne.s32.totalorder %s315, %s329
      %p331 = scmp.eq.s32.totalorder %s32, 0
      %p332 = por %p330, %p331
      %s334 = sadd.s32 %s333, 1
      %p337 = scmp.eq.s32.totalorder %s26, 1
      %p338 = scmp.ne.s32.totalorder %s333, %s335
      %p339 = scmp.eq.s32.totalorder %s26, 0
      %p340 = por %p338, %p339
      %p341 = scmp.ne.s32.totalorder %s333, %s335
      %p342 = scmp.eq.s32.totalorder %s31, 1
      %p343 = por %p341, %p342
      %p344 = scmp.ne.s32.totalorder %s335, %s336
      %p345 = scmp.eq.s32.totalorder %s31, 0
      %p346 = por %p344, %p345
      %p347 = scmp.ne.s32.totalorder %s335, %s336
      %p348 = scmp.eq.s32.totalorder %s32, 1
      %p349 = por %p347, %p348
      %p351 = scmp.ne.s32.totalorder %s336, %s350
      %p352 = scmp.eq.s32.totalorder %s32, 0
      %p353 = por %p351, %p352
      %s354 = ssub.s32 %s26, %s33
      %p355 = scmp.eq.s32.totalorder %s354, 0
      %s357 = sadd.s32 %s356, 1
      %s358 = scalar_select %p355, %s356, %s357
      %p361 = pneg %p355
      %p362 = scmp.eq.s32.totalorder %s26, 1
      %p363 = por %p361, %p362
      %p364 = scmp.ne.s32.totalorder %s356, %s359
      %p365 = scmp.eq.s32.totalorder %s26, 0
      %p366 = por %p364, %p365
      %p367 = scmp.ne.s32.totalorder %s356, %s359
      %p368 = scmp.eq.s32.totalorder %s31, 1
      %p369 = por %p367, %p368
      %p370 = scmp.ne.s32.totalorder %s359, %s360
      %p371 = scmp.eq.s32.totalorder %s31, 0
      %p372 = por %p370, %p371
      %p373 = scmp.ne.s32.totalorder %s359, %s360
      %p374 = scmp.eq.s32.totalorder %s32, 1
      %p375 = por %p373, %p374
      %p377 = scmp.ne.s32.totalorder %s360, %s376
      %p378 = scmp.eq.s32.totalorder %s32, 0
      %p379 = por %p377, %p378
      %p380 = scmp.le.s32.totalorder 1, %s26
      %p381 = scmp.lt.s32.totalorder %s26, 3
      %p382 = pnand %p380, %p381
      %p383 = pneg %p382
      // Predicated region
      $region9: #{tpu_custom_call.1} parent=5 // pred_check
        _
      $region10: #{tpu_custom_call.1} parent=5 // pred_check_branch
        %385 = sbr.rel (%p382) target = $region12
      $region11: #{tpu_custom_call.1} parent=5 // pred_region
        %s386 = ssub.s32 %s26, 1
        // Predicated region
        $region13: #{tpu_custom_call.1} parent=11 // pred_check
          %p387 = pneg %p73
        $region14: #{tpu_custom_call.1} parent=11 // pred_check_branch
          %389 = sbr.rel (%p387) target = $region16
        $region15: #{tpu_custom_call.1} parent=11 // pred_region
          _
        $region16: #{tpu_custom_call.1} parent=11 // pred_fallthru
          _
        // Predicated region
        $region17: #{tpu_custom_call.1} parent=11 // pred_check
          %p390 = pneg %p94
        $region18: #{tpu_custom_call.1} parent=11 // pred_check_branch
          %392 = sbr.rel (%p390) target = $region20
        $region19: #{tpu_custom_call.1} parent=11 // pred_region
          _
        $region20: #{tpu_custom_call.1} parent=11 // pred_fallthru
          _
        // Predicated region
        $region21: #{tpu_custom_call.1} parent=11 // pred_check
          %p393 = pneg %p115
        $region22: #{tpu_custom_call.1} parent=11 // pred_check_branch
          %395 = sbr.rel (%p393) target = $region24
        $region23: #{tpu_custom_call.1} parent=11 // pred_region
          _
        $region24: #{tpu_custom_call.1} parent=11 // pred_fallthru
          _
        // Predicated region
        $region25: #{tpu_custom_call.1} parent=11 // pred_check
          %p396 = pneg %p136
        $region26: #{tpu_custom_call.1} parent=11 // pred_check_branch
          %398 = sbr.rel (%p396) target = $region28
        $region27: #{tpu_custom_call.1} parent=11 // pred_region
          _
        $region28: #{tpu_custom_call.1} parent=11 // pred_fallthru
          _
        // Predicated region
        $region29: #{tpu_custom_call.1} parent=11 // pred_check
          %p399 = pneg %p157
        $region30: #{tpu_custom_call.1} parent=11 // pred_check_branch
          %401 = sbr.rel (%p399) target = $region32
        $region31: #{tpu_custom_call.1} parent=11 // pred_region
          _
        $region32: #{tpu_custom_call.1} parent=11 // pred_fallthru
          _
        // Predicated region
        $region33: #{tpu_custom_call.1} parent=11 // pred_check
          %p402 = pneg %p178
        $region34: #{tpu_custom_call.1} parent=11 // pred_check_branch
          %404 = sbr.rel (%p402) target = $region36
        $region35: #{tpu_custom_call.1} parent=11 // pred_region
          _
        $region36: #{tpu_custom_call.1} parent=11 // pred_fallthru
          _
        // Predicated region
        $region37: #{tpu_custom_call.1} parent=11 // pred_check
          %p405 = pneg %p199
        $region38: #{tpu_custom_call.1} parent=11 // pred_check_branch
          %407 = sbr.rel (%p405) target = $region40
        $region39: #{tpu_custom_call.1} parent=11 // pred_region
          _
        $region40: #{tpu_custom_call.1} parent=11 // pred_fallthru
          _
        // Predicated region
        $region41: #{tpu_custom_call.1} parent=11 // pred_check
          %p408 = pneg %p220
        $region42: #{tpu_custom_call.1} parent=11 // pred_check_branch
          %410 = sbr.rel (%p408) target = $region44
        $region43: #{tpu_custom_call.1} parent=11 // pred_region
          _
        $region44: #{tpu_custom_call.1} parent=11 // pred_fallthru
          _
        // Predicated region
        $region45: #{tpu_custom_call.1} parent=11 // pred_check
          %p411 = pneg %p241
        $region46: #{tpu_custom_call.1} parent=11 // pred_check_branch
          %413 = sbr.rel (%p411) target = $region48
        $region47: #{tpu_custom_call.1} parent=11 // pred_region
          _
        $region48: #{tpu_custom_call.1} parent=11 // pred_fallthru
          _
        // Predicated region
        $region49: #{tpu_custom_call.1} parent=11 // pred_check
          %p414 = pneg %p262
        $region50: #{tpu_custom_call.1} parent=11 // pred_check_branch
          %416 = sbr.rel (%p414) target = $region52
        $region51: #{tpu_custom_call.1} parent=11 // pred_region
          _
        $region52: #{tpu_custom_call.1} parent=11 // pred_fallthru
          _
        // Predicated region
        $region53: #{tpu_custom_call.1} parent=11 // pred_check
          %p417 = pneg %p283
        $region54: #{tpu_custom_call.1} parent=11 // pred_check_branch
          %419 = sbr.rel (%p417) target = $region56
        $region55: #{tpu_custom_call.1} parent=11 // pred_region
          _
        $region56: #{tpu_custom_call.1} parent=11 // pred_fallthru
          _
        // Predicated region
        $region57: #{tpu_custom_call.1} parent=11 // pred_check
          %p420 = pneg %p304
        $region58: #{tpu_custom_call.1} parent=11 // pred_check_branch
          %422 = sbr.rel (%p420) target = $region60
        $region59: #{tpu_custom_call.1} parent=11 // pred_region
          _
        $region60: #{tpu_custom_call.1} parent=11 // pred_fallthru
          _
        // Predicated region
        $region61: #{tpu_custom_call.1} parent=11 // pred_check
          %p423 = pneg %p325
        $region62: #{tpu_custom_call.1} parent=11 // pred_check_branch
          %425 = sbr.rel (%p423) target = $region64
        $region63: #{tpu_custom_call.1} parent=11 // pred_region
          _
        $region64: #{tpu_custom_call.1} parent=11 // pred_fallthru
          _
        // Predicated region
        $region65: #{tpu_custom_call.1} parent=11 // pred_check
          %p426 = pneg %p346
        $region66: #{tpu_custom_call.1} parent=11 // pred_check_branch
          %428 = sbr.rel (%p426) target = $region68
        $region67: #{tpu_custom_call.1} parent=11 // pred_region
          _
        $region68: #{tpu_custom_call.1} parent=11 // pred_fallthru
          _
      $region12: #{tpu_custom_call.1} parent=5 // pred_fallthru
        _
      %p429 = scmp.lt.s32.totalorder %s26, 2
      // Predicated region
      $region69: #{tpu_custom_call.1} parent=5 // pred_check
        %p430 = pneg %p429
      $region70: #{tpu_custom_call.1} parent=5 // pred_check_branch
        %432 = sbr.rel (%p430) target = $region72
      $region71: #{tpu_custom_call.1} parent=5 // pred_region
        // Predicated region
        $region73: #{tpu_custom_call.1} parent=71 // pred_check
          %p433 = pneg %p46
        $region74: #{tpu_custom_call.1} parent=71 // pred_check_branch
          %435 = sbr.rel (%p433) target = $region76
        $region75: #{tpu_custom_call.1} parent=71 // pred_region
          %p436 = scmp.lt.s32.totalorder %s26, 1
          %s437 = scalar_select %p436, %s26, 1
          %s438 = scalar_lea.vmem %s0, %s437
        $region76: #{tpu_custom_call.1} parent=71 // pred_fallthru
          _
      $region72: #{tpu_custom_call.1} parent=5 // pred_fallthru
        _
      %p439 = scmp.le.s32.totalorder 1, %s26
      %p440 = scmp.lt.s32.totalorder %s26, 3
      %p441 = pnand %p439, %p440
      %p442 = pneg %p441
      // Predicated region
      $region77: #{tpu_custom_call.1} parent=5 // pred_check
        _
      $region78: #{tpu_custom_call.1} parent=5 // pred_check_branch
        %444 = sbr.rel (%p441) target = $region80
      $region79: #{tpu_custom_call.1} parent=5 // pred_region
        %s445 = ssub.s32 %s26, 1
        %p446 = scmp.lt.s32.totalorder %s31, 1
        %s447 = scalar_select %p446, %s31, 1
        %s448 = scalar_lea.vmem %s0, %s447
        %p449 = pneg %p52
        %p450 = pneg %p49
        %p451 = pneg %p73
        %p452 = pneg %p70
        %p453 = pneg %p94
        %p454 = pneg %p91
        %p455 = pneg %p115
        %p456 = pneg %p112
        %p457 = pneg %p136
        %p458 = pneg %p133
        %p459 = pneg %p157
        %p460 = pneg %p154
        %p461 = pneg %p178
        %p462 = pneg %p175
        %p463 = pneg %p199
        %p464 = pneg %p196
        %p465 = pneg %p220
        %p466 = pneg %p217
        %p467 = pneg %p241
        %p468 = pneg %p238
        %p469 = pneg %p262
        %p470 = pneg %p259
        %p471 = pneg %p283
        %p472 = pneg %p280
        %p473 = pneg %p304
        %p474 = pneg %p301
        %p475 = pneg %p325
        %p476 = pneg %p322
        %p477 = pneg %p346
        %p478 = pneg %p343
        %p479 = pneg %p372
        %p480 = pneg %p369
        %s481 = sand.u32 %s359, 1
        %s482 = scalar_lea.sflag [#allocation5], %s481
        %s483 = sand.u32 %s359, 1
        %s484 = scalar_lea.vmem [#allocation4], %s483
        %p485 = scmp.lt.s32.totalorder %s31, 1
        %s486 = scalar_select %p485, %s31, 1
        %s487 = scalar_lea.vmem %s0, %s486
        %v488 = vld [vmem:[%s487] sm:$0x1]
        %v489 = vld [vmem:[%s1] sm:$0x1]
        %v490 = vld [vmem:[%s2] sm:$0x1]
        %v491 = vld [vmem:[%s3] sm:$0xff]
        %v492 = vld [vmem:[%s3 + $0x8] sm:$0xff]
        %v493 = vld [vmem:[%s3 + $0x10] sm:$0xff]
        %v494 = vld [vmem:[%s3 + $0x18] sm:$0xff]
        %v496 = vlaneseq
        %v497 = vshrl.u32 %v496, 7
        %v498 = vsub.s32 0, %v497
        %v499 = vrot.slane %v488, %v498
        %500 = vrot.lane.b32.xlu0 %v499, 1
        %v501 = vpop.permute.xlu0 %500
        %v503 = vmul.f32 %v501, %v489
        %v504 = vlaneseq
        %v505 = vshrl.u32 %v504, 7
        %v506 = vsub.s32 0, %v505
        %v507 = vrot.slane %v503, %v506
        %509 = vset.pattern.permute.xlu0 0
        %510 = vperm.xlu0 %509, %v491
        %v511 = vpop.permute.xlu0 %510
        %514 = vset.pattern.permute.xlu0 0
        %515 = vperm.xlu0 %514, %v492
        %v516 = vpop.permute.xlu0 %515
        %519 = vset.pattern.permute.xlu0 0
        %520 = vperm.xlu0 %519, %v493
        %v521 = vpop.permute.xlu0 %520
        %524 = vset.pattern.permute.xlu0 0
        %525 = vperm.xlu0 %524, %v494
        %v526 = vpop.permute.xlu0 %525
        %v528 = vmul.f32 %v507, %v511
        %v529 = vmul.f32 %v507, %v516
        %v530 = vmul.f32 %v507, %v521
        %v531 = vmul.f32 %v507, %v526
        %533 = vset.pattern.permute.xlu0 1
        %534 = vperm.xlu0 %533, %v491
        %v535 = vpop.permute.xlu0 %534
        %537 = vset.pattern.permute.xlu0 1
        %538 = vperm.xlu0 %537, %v492
        %v539 = vpop.permute.xlu0 %538
        %541 = vset.pattern.permute.xlu0 1
        %542 = vperm.xlu0 %541, %v493
        %v543 = vpop.permute.xlu0 %542
        %545 = vset.pattern.permute.xlu0 1
        %546 = vperm.xlu0 %545, %v494
        %v547 = vpop.permute.xlu0 %546
        %v549 = vmul.f32 %v499, %v535
        %v550 = vmul.f32 %v499, %v539
        %v551 = vmul.f32 %v499, %v543
        %v552 = vmul.f32 %v499, %v547
        %v553 = vadd.f32 %v528, %v549
        %v554 = vadd.f32 %v529, %v550
        %v555 = vadd.f32 %v530, %v551
        %v556 = vadd.f32 %v531, %v552
        %557 = vrot.lane.b32.xlu0 %v499, 127
        %v558 = vpop.permute.xlu0 %557
        %v560 = vmul.f32 %v558, %v490
        %v561 = vlaneseq
        %v562 = vshrl.u32 %v561, 7
        %v563 = vsub.s32 0, %v562
        %v564 = vrot.slane %v560, %v563
        %565 = vset.pattern.permute.xlu0 2
        %566 = vperm.xlu0 %565, %v491
        %v567 = vpop.permute.xlu0 %566
        %569 = vset.pattern.permute.xlu0 2
        %570 = vperm.xlu0 %569, %v492
        %v571 = vpop.permute.xlu0 %570
        %573 = vset.pattern.permute.xlu0 2
        %574 = vperm.xlu0 %573, %v493
        %v575 = vpop.permute.xlu0 %574
        %577 = vset.pattern.permute.xlu0 2
        %578 = vperm.xlu0 %577, %v494
        %v579 = vpop.permute.xlu0 %578
        %v581 = vmul.f32 %v564, %v567
        %v582 = vmul.f32 %v564, %v571
        %v583 = vmul.f32 %v564, %v575
        %v584 = vmul.f32 %v564, %v579
        %v585 = vadd.f32 %v553, %v581
        %v586 = vadd.f32 %v554, %v582
        %v587 = vadd.f32 %v555, %v583
        %v588 = vadd.f32 %v556, %v584
        %v589 = vld [vmem:[%s4] sm:$0xff]
        %v590 = vld [vmem:[%s4 + $0x8] sm:$0xff]
        %v591 = vld [vmem:[%s4 + $0x10] sm:$0xff]
        %v592 = vld [vmem:[%s4 + $0x18] sm:$0xff]
        %594 = vset.pattern.permute.xlu0 0
        %595 = vperm.xlu0 %594, %v589
        %v596 = vpop.permute.xlu0 %595
        %599 = vset.pattern.permute.xlu0 0
        %600 = vperm.xlu0 %599, %v590
        %v601 = vpop.permute.xlu0 %600
        %604 = vset.pattern.permute.xlu0 0
        %605 = vperm.xlu0 %604, %v591
        %v606 = vpop.permute.xlu0 %605
        %609 = vset.pattern.permute.xlu0 0
        %610 = vperm.xlu0 %609, %v592
        %v611 = vpop.permute.xlu0 %610
        %v613 = vadd.f32 %v585, %v596
        %v614 = vadd.f32 %v586, %v601
        %v615 = vadd.f32 %v587, %v606
        %v616 = vadd.f32 %v588, %v611
        %v617 = vmax.f32 %v613, 0.0
        %v618 = vmax.f32 %v614, 0.0
        %v619 = vmax.f32 %v615, 0.0
        %v620 = vmax.f32 %v616, 0.0
        %625 = vrot.lane.b32.xlu0 %v617, 1
        %v626 = vpop.permute.xlu0 %625
        %627 = vrot.lane.b32.xlu0 %v618, 1
        %v628 = vpop.permute.xlu0 %627
        %629 = vrot.lane.b32.xlu0 %v619, 1
        %v630 = vpop.permute.xlu0 %629
        %631 = vrot.lane.b32.xlu0 %v620, 1
        %v632 = vpop.permute.xlu0 %631
        %v638 = vlaneseq
        %v639 = vshrl.u32 %v638, 7
        %v640 = vsub.s32 0, %v639
        %v641 = vrot.slane %v489, %v640
        %v643 = vmul.f32 %v626, %v641
        %v644 = vmul.f32 %v628, %v641
        %v645 = vmul.f32 %v630, %v641
        %v646 = vmul.f32 %v632, %v641
        %647 = vst [vmem:[#allocation2] sm:$0xff] %v643
        %648 = vst [vmem:[#allocation2 + $0x8] sm:$0xff] %v644
        %649 = vst [vmem:[#allocation2 + $0x10] sm:$0xff] %v645
        %650 = vst [vmem:[#allocation2 + $0x18] sm:$0xff] %v646
        %651 = vst [vmem:[#allocation2 + $0x20] sm:$0xff] %v617
        %652 = vst [vmem:[#allocation2 + $0x28] sm:$0xff] %v618
        %653 = vst [vmem:[#allocation2 + $0x30] sm:$0xff] %v619
        %654 = vst [vmem:[#allocation2 + $0x38] sm:$0xff] %v620
        %655 = vrot.lane.b32.xlu0 %v617, 127
        %v656 = vpop.permute.xlu0 %655
        %657 = vrot.lane.b32.xlu0 %v618, 127
        %v658 = vpop.permute.xlu0 %657
        %659 = vrot.lane.b32.xlu0 %v619, 127
        %v660 = vpop.permute.xlu0 %659
        %661 = vrot.lane.b32.xlu0 %v620, 127
        %v662 = vpop.permute.xlu0 %661
        %v668 = vlaneseq
        %v669 = vshrl.u32 %v668, 7
        %v670 = vsub.s32 0, %v669
        %v671 = vrot.slane %v490, %v670
        %v673 = vmul.f32 %v656, %v671
        %v674 = vmul.f32 %v658, %v671
        %v675 = vmul.f32 %v660, %v671
        %v676 = vmul.f32 %v662, %v671
        %677 = vst [vmem:[#allocation2 + $0x40] sm:$0xff] %v673
        %678 = vst [vmem:[#allocation2 + $0x48] sm:$0xff] %v674
        %679 = vst [vmem:[#allocation2 + $0x50] sm:$0xff] %v675
        %680 = vst [vmem:[#allocation2 + $0x58] sm:$0xff] %v676
        %v681 = vld [vmem:[%s5] sm:$0xff]
        %v682 = vld [vmem:[%s5 + $0x8] sm:$0xff]
        %v683 = vld [vmem:[%s5 + $0x10] sm:$0xff]
        %v684 = vld [vmem:[%s5 + $0x18] sm:$0xff]
        %v685 = vld [vmem:[#allocation2] sm:$0xff]
        %v686 = vld [vmem:[#allocation2 + $0x8] sm:$0xff]
        %v687 = vld [vmem:[#allocation2 + $0x10] sm:$0xff]
        %v688 = vld [vmem:[#allocation2 + $0x18] sm:$0xff]
        %v689 = vld [vmem:[#allocation2 + $0x20] sm:$0xff]
        %v690 = vld [vmem:[#allocation2 + $0x28] sm:$0xff]
        %v691 = vld [vmem:[#allocation2 + $0x30] sm:$0xff]
        %v692 = vld [vmem:[#allocation2 + $0x38] sm:$0xff]
        %v693 = vld [vmem:[#allocation2 + $0x40] sm:$0xff]
        %v694 = vld [vmem:[#allocation2 + $0x48] sm:$0xff]
        %v695 = vld [vmem:[#allocation2 + $0x50] sm:$0xff]
        %v696 = vld [vmem:[#allocation2 + $0x58] sm:$0xff]
        %v697 = vld [vmem:[%s6] sm:$0xff]
        %v698 = vld [vmem:[%s6 + $0x8] sm:$0xff]
        %v699 = vld [vmem:[%s6 + $0x10] sm:$0xff]
        %v700 = vld [vmem:[%s6 + $0x18] sm:$0xff]
        %702 = vset.pattern.permute.xlu0 0
        %703 = vperm.xlu0 %702, %v697
        %v704 = vpop.permute.xlu0 %703
        %707 = vset.pattern.permute.xlu0 0
        %708 = vperm.xlu0 %707, %v698
        %v709 = vpop.permute.xlu0 %708
        %712 = vset.pattern.permute.xlu0 0
        %713 = vperm.xlu0 %712, %v699
        %v714 = vpop.permute.xlu0 %713
        %717 = vset.pattern.permute.xlu0 0
        %718 = vperm.xlu0 %717, %v700
        %v719 = vpop.permute.xlu0 %718
        %vm721 = vcmask 785408
        %v723 = vsel %vm721, %v681, 0
        %v726 = vsel %vm721, %v682, 0
        %v729 = vsel %vm721, %v683, 0
        %v732 = vsel %vm721, %v684, 0
        %734 = vmatprep.subr.mxu0 0.0
        %735 = vmatpush1.msra.mxu0 0.0
        %736 = vmatprep.subr.mxu0 0.0
        %737 = vmatpush1.msra.mxu0 0.0
        %738 = vmatprep.subr.mxu0 0.0
        %739 = vmatpush1.msra.mxu0 0.0
        %740 = vmatprep.subr.mxu0 0.0
        %741 = vmatpush1.msra.mxu0 0.0
        %742 = vmatprep.subr.mxu0 0.0
        %743 = vmatpush1.msra.mxu0 %v696
        %744 = vmatprep.subr.mxu0 0.0
        %745 = vmatpush1.msra.mxu0 %v695
        %746 = vmatprep.subr.mxu0 0.0
        %747 = vmatpush1.msra.mxu0 %v694
        %748 = vmatprep.subr.mxu0 0.0
        %749 = vmatpush1.msra.mxu0 %v693
        %750 = vmatprep.subr.mxu0 0.0
        %751 = vmatpush1.msra.mxu0 %v692
        %752 = vmatprep.subr.mxu0 0.0
        %753 = vmatpush1.msra.mxu0 %v691
        %754 = vmatprep.subr.mxu0 0.0
        %755 = vmatpush1.msra.mxu0 %v690
        %756 = vmatprep.subr.mxu0 0.0
        %757 = vmatpush1.msra.mxu0 %v689
        %758 = vmatprep.subr.mxu0 0.0
        %759 = vmatpush1.msra.mxu0 %v688
        %760 = vmatprep.subr.mxu0 0.0
        %761 = vmatpush1.msra.mxu0 %v687
        %762 = vmatprep.subr.mxu0 0.0
        %763 = vmatpush1.msra.mxu0 %v686
        %764 = vmatprep.subr.mxu0 0.0
        %765 = vmatpush1.msra.mxu0 %v685
        %766 = vmatprep.subr.mxu0 0.0
        %767 = vmatpush2.msra.mxu0 0.0
        %768 = vmatprep.subr.mxu0 0.0
        %769 = vmatpush2.msra.mxu0 0.0
        %770 = vmatprep.subr.mxu0 0.0
        %771 = vmatpush2.msra.mxu0 0.0
        %772 = vmatprep.subr.mxu0 0.0
        %773 = vmatpush2.msra.mxu0 0.0
        %774 = vmatprep.subr.mxu0 0.0
        %775 = vmatpush2.msra.mxu0 0.0
        %776 = vmatprep.subr.mxu0 0.0
        %777 = vmatpush2.msra.mxu0 0.0
        %778 = vmatprep.subr.mxu0 0.0
        %779 = vmatpush2.msra.mxu0 0.0
        %780 = vmatprep.subr.mxu0 0.0
        %781 = vmatpush2.msra.mxu0 0.0
        %782 = vmatprep.subr.mxu0 0.0
        %783 = vmatpush2.msra.mxu0 0.0
        %784 = vmatprep.subr.mxu0 0.0
        %785 = vmatpush2.msra.mxu0 0.0
        %786 = vmatprep.subr.mxu0 0.0
        %787 = vmatpush2.msra.mxu0 0.0
        %788 = vmatprep.subr.mxu0 0.0
        %789 = vmatpush2.msra.mxu0 0.0
        %790 = vmatprep.subr.mxu0 0.0
        %791 = vmatpush2.msra.mxu0 0.0
        %792 = vmatprep.subr.mxu0 0.0
        %793 = vmatpush2.msra.mxu0 0.0
        %794 = vmatprep.subr.mxu0 0.0
        %795 = vmatpush2.msra.mxu0 0.0
        %796 = vmatprep.subr.mxu0 0.0
        %797 = vmatpush2.msra.mxu0 0.0
        %798 = vmatprep.mubr.f32.mxu0 0.0
        %799 = vmatmul.mubr.f32.gmra.mxu0 %v723
        %v800 = vpop.f32.mrf.mxu0
        %v801 = vadd.f32 %v704, %v800
        %v802 = vpop.f32.mrf.mxu0
        %803 = vmatprep.mubr.f32.mxu0 0.0
        %804 = vmatmul.mubr.f32.gmra.mxu0 %v726
        %v805 = vpop.f32.mrf.mxu0
        %v806 = vadd.f32 %v709, %v805
        %v807 = vpop.f32.mrf.mxu0
        %808 = vmatprep.mubr.f32.mxu0 0.0
        %809 = vmatmul.mubr.f32.gmra.mxu0 %v729
        %v810 = vpop.f32.mrf.mxu0
        %v811 = vadd.f32 %v714, %v810
        %v812 = vpop.f32.mrf.mxu0
        %813 = vmatprep.mubr.f32.mxu0 0.0
        %814 = vmatmul.mubr.f32.gmra.mxu0 %v732
        %v815 = vpop.f32.mrf.mxu0
        %v816 = vadd.f32 %v719, %v815
        %v817 = vpop.f32.mrf.mxu0
        %818 = vdwg.mxu0
        %vm819 = vcmp.gt.f32.partialorder %v801, 0.0
        %vm820 = vcmp.gt.f32.partialorder %v806, 0.0
        %vm821 = vcmp.gt.f32.partialorder %v811, 0.0
        %vm822 = vcmp.gt.f32.partialorder %v816, 0.0
        %v823 = vmul.f32 %v801, 1.442695
        %v824 = vpow.pop %v823
        %v825 = vmul.f32 %v806, 1.442695
        %v826 = vpow.pop %v825
        %v827 = vmul.f32 %v811, 1.442695
        %v828 = vpow.pop %v827
        %v829 = vmul.f32 %v816, 1.442695
        %v830 = vpow.pop %v829
        %v831 = vsub.f32 %v824, 1.0
        %v832 = vsub.f32 %v826, 1.0
        %v833 = vsub.f32 %v828, 1.0
        %v834 = vsub.f32 %v830, 1.0
        %v835 = vmul.f32 %v831, 1.6732632
        %v836 = vmul.f32 %v832, 1.6732632
        %v837 = vmul.f32 %v833, 1.6732632
        %v838 = vmul.f32 %v834, 1.6732632
        %v839 = vsel %vm819, %v801, %v835
        %v840 = vsel %vm820, %v806, %v836
        %v841 = vsel %vm821, %v811, %v837
        %v842 = vsel %vm822, %v816, %v838
        %v843 = vmul.f32 %v839, 1.050701
        %v844 = vmul.f32 %v840, 1.050701
        %v845 = vmul.f32 %v841, 1.050701
        %v846 = vmul.f32 %v842, 1.050701
        %851 = vrot.lane.b32.xlu0 %v843, 1
        %v852 = vpop.permute.xlu0 %851
        %853 = vrot.lane.b32.xlu0 %v844, 1
        %v854 = vpop.permute.xlu0 %853
        %855 = vrot.lane.b32.xlu0 %v845, 1
        %v856 = vpop.permute.xlu0 %855
        %857 = vrot.lane.b32.xlu0 %v846, 1
        %v858 = vpop.permute.xlu0 %857
        %v863 = vmul.f32 %v852, %v641
        %v864 = vmul.f32 %v854, %v641
        %v865 = vmul.f32 %v856, %v641
        %v866 = vmul.f32 %v858, %v641
        %867 = vst [vmem:[#allocation2] sm:$0xff] %v863
        %868 = vst [vmem:[#allocation2 + $0x8] sm:$0xff] %v864
        %869 = vst [vmem:[#allocation2 + $0x10] sm:$0xff] %v865
        %870 = vst [vmem:[#allocation2 + $0x18] sm:$0xff] %v866
        %871 = vst [vmem:[#allocation2 + $0x20] sm:$0xff] %v843
        %872 = vst [vmem:[#allocation2 + $0x28] sm:$0xff] %v844
        %873 = vst [vmem:[#allocation2 + $0x30] sm:$0xff] %v845
        %874 = vst [vmem:[#allocation2 + $0x38] sm:$0xff] %v846
        %875 = vrot.lane.b32.xlu0 %v843, 127
        %v876 = vpop.permute.xlu0 %875
        %877 = vrot.lane.b32.xlu0 %v844, 127
        %v878 = vpop.permute.xlu0 %877
        %879 = vrot.lane.b32.xlu0 %v845, 127
        %v880 = vpop.permute.xlu0 %879
        %881 = vrot.lane.b32.xlu0 %v846, 127
        %v882 = vpop.permute.xlu0 %881
        %v887 = vmul.f32 %v876, %v671
        %v888 = vmul.f32 %v878, %v671
        %v889 = vmul.f32 %v880, %v671
        %v890 = vmul.f32 %v882, %v671
        %891 = vst [vmem:[#allocation2 + $0x40] sm:$0xff] %v887
        %892 = vst [vmem:[#allocation2 + $0x48] sm:$0xff] %v888
        %893 = vst [vmem:[#allocation2 + $0x50] sm:$0xff] %v889
        %894 = vst [vmem:[#allocation2 + $0x58] sm:$0xff] %v890
        %v895 = vld [vmem:[%s7] sm:$0xff]
        %v896 = vld [vmem:[%s7 + $0x8] sm:$0xff]
        %v897 = vld [vmem:[%s7 + $0x10] sm:$0xff]
        %v898 = vld [vmem:[%s7 + $0x18] sm:$0xff]
        %v899 = vld [vmem:[#allocation2] sm:$0xff]
        %v900 = vld [vmem:[#allocation2 + $0x8] sm:$0xff]
        %v901 = vld [vmem:[#allocation2 + $0x10] sm:$0xff]
        %v902 = vld [vmem:[#allocation2 + $0x18] sm:$0xff]
        %v903 = vld [vmem:[#allocation2 + $0x20] sm:$0xff]
        %v904 = vld [vmem:[#allocation2 + $0x28] sm:$0xff]
        %v905 = vld [vmem:[#allocation2 + $0x30] sm:$0xff]
        %v906 = vld [vmem:[#allocation2 + $0x38] sm:$0xff]
        %v907 = vld [vmem:[#allocation2 + $0x40] sm:$0xff]
        %v908 = vld [vmem:[#allocation2 + $0x48] sm:$0xff]
        %v909 = vld [vmem:[#allocation2 + $0x50] sm:$0xff]
        %v910 = vld [vmem:[#allocation2 + $0x58] sm:$0xff]
        %v911 = vld [vmem:[%s8] sm:$0xff]
        %v912 = vld [vmem:[%s8 + $0x8] sm:$0xff]
        %v913 = vld [vmem:[%s8 + $0x10] sm:$0xff]
        %v914 = vld [vmem:[%s8 + $0x18] sm:$0xff]
        %916 = vset.pattern.permute.xlu0 0
        %917 = vperm.xlu0 %916, %v911
        %v918 = vpop.permute.xlu0 %917
        %921 = vset.pattern.permute.xlu0 0
        %922 = vperm.xlu0 %921, %v912
        %v923 = vpop.permute.xlu0 %922
        %926 = vset.pattern.permute.xlu0 0
        %927 = vperm.xlu0 %926, %v913
        %v928 = vpop.permute.xlu0 %927
        %931 = vset.pattern.permute.xlu0 0
        %932 = vperm.xlu0 %931, %v914
        %v933 = vpop.permute.xlu0 %932
        %v936 = vsel %vm721, %v895, 0
        %v939 = vsel %vm721, %v896, 0
        %v942 = vsel %vm721, %v897, 0
        %v945 = vsel %vm721, %v898, 0
        %947 = vmatprep.subr.mxu0 0.0
        %948 = vmatpush1.msra.mxu0 0.0
        %949 = vmatprep.subr.mxu0 0.0
        %950 = vmatpush1.msra.mxu0 0.0
        %951 = vmatprep.subr.mxu0 0.0
        %952 = vmatpush1.msra.mxu0 0.0
        %953 = vmatprep.subr.mxu0 0.0
        %954 = vmatpush1.msra.mxu0 0.0
        %955 = vmatprep.subr.mxu0 0.0
        %956 = vmatpush1.msra.mxu0 %v910
        %957 = vmatprep.subr.mxu0 0.0
        %958 = vmatpush1.msra.mxu0 %v909
        %959 = vmatprep.subr.mxu0 0.0
        %960 = vmatpush1.msra.mxu0 %v908
        %961 = vmatprep.subr.mxu0 0.0
        %962 = vmatpush1.msra.mxu0 %v907
        %963 = vmatprep.subr.mxu0 0.0
        %964 = vmatpush1.msra.mxu0 %v906
        %965 = vmatprep.subr.mxu0 0.0
        %966 = vmatpush1.msra.mxu0 %v905
        %967 = vmatprep.subr.mxu0 0.0
        %968 = vmatpush1.msra.mxu0 %v904
        %969 = vmatprep.subr.mxu0 0.0
        %970 = vmatpush1.msra.mxu0 %v903
        %971 = vmatprep.subr.mxu0 0.0
        %972 = vmatpush1.msra.mxu0 %v902
        %973 = vmatprep.subr.mxu0 0.0
        %974 = vmatpush1.msra.mxu0 %v901
        %975 = vmatprep.subr.mxu0 0.0
        %976 = vmatpush1.msra.mxu0 %v900
        %977 = vmatprep.subr.mxu0 0.0
        %978 = vmatpush1.msra.mxu0 %v899
        %979 = vmatprep.subr.mxu0 0.0
        %980 = vmatpush2.msra.mxu0 0.0
        %981 = vmatprep.subr.mxu0 0.0
        %982 = vmatpush2.msra.mxu0 0.0
        %983 = vmatprep.subr.mxu0 0.0
        %984 = vmatpush2.msra.mxu0 0.0
        %985 = vmatprep.subr.mxu0 0.0
        %986 = vmatpush2.msra.mxu0 0.0
        %987 = vmatprep.subr.mxu0 0.0
        %988 = vmatpush2.msra.mxu0 0.0
        %989 = vmatprep.subr.mxu0 0.0
        %990 = vmatpush2.msra.mxu0 0.0
        %991 = vmatprep.subr.mxu0 0.0
        %992 = vmatpush2.msra.mxu0 0.0
        %993 = vmatprep.subr.mxu0 0.0
        %994 = vmatpush2.msra.mxu0 0.0
        %995 = vmatprep.subr.mxu0 0.0
        %996 = vmatpush2.msra.mxu0 0.0
        %997 = vmatprep.subr.mxu0 0.0
        %998 = vmatpush2.msra.mxu0 0.0
        %999 = vmatprep.subr.mxu0 0.0
        %1000 = vmatpush2.msra.mxu0 0.0
        %1001 = vmatprep.subr.mxu0 0.0
        %1002 = vmatpush2.msra.mxu0 0.0
        %1003 = vmatprep.subr.mxu0 0.0
        %1004 = vmatpush2.msra.mxu0 0.0
        %1005 = vmatprep.subr.mxu0 0.0
        %1006 = vmatpush2.msra.mxu0 0.0
        %1007 = vmatprep.subr.mxu0 0.0
        %1008 = vmatpush2.msra.mxu0 0.0
        %1009 = vmatprep.subr.mxu0 0.0
        %1010 = vmatpush2.msra.mxu0 0.0
        %1011 = vmatprep.mubr.f32.mxu0 0.0
        %1012 = vmatmul.mubr.f32.gmra.mxu0 %v936
        %v1013 = vpop.f32.mrf.mxu0
        %v1014 = vadd.f32 %v918, %v1013
        %v1015 = vpop.f32.mrf.mxu0
        %1016 = vmatprep.mubr.f32.mxu0 0.0
        %1017 = vmatmul.mubr.f32.gmra.mxu0 %v939
        %v1018 = vpop.f32.mrf.mxu0
        %v1019 = vadd.f32 %v923, %v1018
        %v1020 = vpop.f32.mrf.mxu0
        %1021 = vmatprep.mubr.f32.mxu0 0.0
        %1022 = vmatmul.mubr.f32.gmra.mxu0 %v942
        %v1023 = vpop.f32.mrf.mxu0
        %v1024 = vadd.f32 %v928, %v1023
        %v1025 = vpop.f32.mrf.mxu0
        %1026 = vmatprep.mubr.f32.mxu0 0.0
        %1027 = vmatmul.mubr.f32.gmra.mxu0 %v945
        %v1028 = vpop.f32.mrf.mxu0
        %v1029 = vadd.f32 %v933, %v1028
        %v1030 = vpop.f32.mrf.mxu0
        %1031 = vdwg.mxu0
        %v1032 = vadd.f32 %v1014, %v617
        %v1033 = vadd.f32 %v1019, %v618
        %v1034 = vadd.f32 %v1024, %v619
        %v1035 = vadd.f32 %v1029, %v620
        %vm1036 = vcmp.gt.f32.partialorder %v1032, 0.0
        %vm1037 = vcmp.gt.f32.partialorder %v1033, 0.0
        %vm1038 = vcmp.gt.f32.partialorder %v1034, 0.0
        %vm1039 = vcmp.gt.f32.partialorder %v1035, 0.0
        %v1040 = vmul.f32 %v1032, 1.442695
        %v1041 = vpow.pop %v1040
        %v1042 = vmul.f32 %v1033, 1.442695
        %v1043 = vpow.pop %v1042
        %v1044 = vmul.f32 %v1034, 1.442695
        %v1045 = vpow.pop %v1044
        %v1046 = vmul.f32 %v1035, 1.442695
        %v1047 = vpow.pop %v1046
        %v1048 = vsub.f32 %v1041, 1.0
        %v1049 = vsub.f32 %v1043, 1.0
        %v1050 = vsub.f32 %v1045, 1.0
        %v1051 = vsub.f32 %v1047, 1.0
        %v1052 = vmul.f32 %v1048, 1.6732632
        %v1053 = vmul.f32 %v1049, 1.6732632
        %v1054 = vmul.f32 %v1050, 1.6732632
        %v1055 = vmul.f32 %v1051, 1.6732632
        %v1056 = vsel %vm1036, %v1032, %v1052
        %v1057 = vsel %vm1037, %v1033, %v1053
        %v1058 = vsel %vm1038, %v1034, %v1054
        %v1059 = vsel %vm1039, %v1035, %v1055
        %v1060 = vmul.f32 %v1056, 1.050701
        %v1061 = vmul.f32 %v1057, 1.050701
        %v1062 = vmul.f32 %v1058, 1.050701
        %v1063 = vmul.f32 %v1059, 1.050701
        %1068 = vrot.lane.b32.xlu0 %v1060, 1
        %v1069 = vpop.permute.xlu0 %1068
        %1070 = vrot.lane.b32.xlu0 %v1061, 1
        %v1071 = vpop.permute.xlu0 %1070
        %1072 = vrot.lane.b32.xlu0 %v1062, 1
        %v1073 = vpop.permute.xlu0 %1072
        %1074 = vrot.lane.b32.xlu0 %v1063, 1
        %v1075 = vpop.permute.xlu0 %1074
        %v1080 = vmul.f32 %v1069, %v641
        %v1081 = vmul.f32 %v1071, %v641
        %v1082 = vmul.f32 %v1073, %v641
        %v1083 = vmul.f32 %v1075, %v641
        %1084 = vst [vmem:[#allocation2] sm:$0xff] %v1080
        %1085 = vst [vmem:[#allocation2 + $0x8] sm:$0xff] %v1081
        %1086 = vst [vmem:[#allocation2 + $0x10] sm:$0xff] %v1082
        %1087 = vst [vmem:[#allocation2 + $0x18] sm:$0xff] %v1083
        %1088 = vst [vmem:[#allocation2 + $0x20] sm:$0xff] %v1060
        %1089 = vst [vmem:[#allocation2 + $0x28] sm:$0xff] %v1061
        %1090 = vst [vmem:[#allocation2 + $0x30] sm:$0xff] %v1062
        %1091 = vst [vmem:[#allocation2 + $0x38] sm:$0xff] %v1063
        %1092 = vrot.lane.b32.xlu0 %v1060, 127
        %v1093 = vpop.permute.xlu0 %1092
        %1094 = vrot.lane.b32.xlu0 %v1061, 127
        %v1095 = vpop.permute.xlu0 %1094
        %1096 = vrot.lane.b32.xlu0 %v1062, 127
        %v1097 = vpop.permute.xlu0 %1096
        %1098 = vrot.lane.b32.xlu0 %v1063, 127
        %v1099 = vpop.permute.xlu0 %1098
        %v1104 = vmul.f32 %v1093, %v671
        %v1105 = vmul.f32 %v1095, %v671
        %v1106 = vmul.f32 %v1097, %v671
        %v1107 = vmul.f32 %v1099, %v671
        %1108 = vst [vmem:[#allocation2 + $0x40] sm:$0xff] %v1104
        %1109 = vst [vmem:[#allocation2 + $0x48] sm:$0xff] %v1105
        %1110 = vst [vmem:[#allocation2 + $0x50] sm:$0xff] %v1106
        %1111 = vst [vmem:[#allocation2 + $0x58] sm:$0xff] %v1107
        %v1112 = vld [vmem:[%s9] sm:$0xff]
        %v1113 = vld [vmem:[%s9 + $0x8] sm:$0xff]
        %v1114 = vld [vmem:[%s9 + $0x10] sm:$0xff]
        %v1115 = vld [vmem:[%s9 + $0x18] sm:$0xff]
        %v1116 = vld [vmem:[#allocation2] sm:$0xff]
        %v1117 = vld [vmem:[#allocation2 + $0x8] sm:$0xff]
        %v1118 = vld [vmem:[#allocation2 + $0x10] sm:$0xff]
        %v1119 = vld [vmem:[#allocation2 + $0x18] sm:$0xff]
        %v1120 = vld [vmem:[#allocation2 + $0x20] sm:$0xff]
        %v1121 = vld [vmem:[#allocation2 + $0x28] sm:$0xff]
        %v1122 = vld [vmem:[#allocation2 + $0x30] sm:$0xff]
        %v1123 = vld [vmem:[#allocation2 + $0x38] sm:$0xff]
        %v1124 = vld [vmem:[#allocation2 + $0x40] sm:$0xff]
        %v1125 = vld [vmem:[#allocation2 + $0x48] sm:$0xff]
        %v1126 = vld [vmem:[#allocation2 + $0x50] sm:$0xff]
        %v1127 = vld [vmem:[#allocation2 + $0x58] sm:$0xff]
        %v1128 = vld [vmem:[%s10] sm:$0xff]
        %v1129 = vld [vmem:[%s10 + $0x8] sm:$0xff]
        %v1130 = vld [vmem:[%s10 + $0x10] sm:$0xff]
        %v1131 = vld [vmem:[%s10 + $0x18] sm:$0xff]
        %1133 = vset.pattern.permute.xlu0 0
        %1134 = vperm.xlu0 %1133, %v1128
        %v1135 = vpop.permute.xlu0 %1134
        %1138 = vset.pattern.permute.xlu0 0
        %1139 = vperm.xlu0 %1138, %v1129
        %v1140 = vpop.permute.xlu0 %1139
        %1143 = vset.pattern.permute.xlu0 0
        %1144 = vperm.xlu0 %1143, %v1130
        %v1145 = vpop.permute.xlu0 %1144
        %1148 = vset.pattern.permute.xlu0 0
        %1149 = vperm.xlu0 %1148, %v1131
        %v1150 = vpop.permute.xlu0 %1149
        %v1153 = vsel %vm721, %v1112, 0
        %v1156 = vsel %vm721, %v1113, 0
        %v1159 = vsel %vm721, %v1114, 0
        %v1162 = vsel %vm721, %v1115, 0
        %1164 = vmatprep.subr.mxu0 0.0
        %1165 = vmatpush1.msra.mxu0 0.0
        %1166 = vmatprep.subr.mxu0 0.0
        %1167 = vmatpush1.msra.mxu0 0.0
        %1168 = vmatprep.subr.mxu0 0.0
        %1169 = vmatpush1.msra.mxu0 0.0
        %1170 = vmatprep.subr.mxu0 0.0
        %1171 = vmatpush1.msra.mxu0 0.0
        %1172 = vmatprep.subr.mxu0 0.0
        %1173 = vmatpush1.msra.mxu0 %v1127
        %1174 = vmatprep.subr.mxu0 0.0
        %1175 = vmatpush1.msra.mxu0 %v1126
        %1176 = vmatprep.subr.mxu0 0.0
        %1177 = vmatpush1.msra.mxu0 %v1125
        %1178 = vmatprep.subr.mxu0 0.0
        %1179 = vmatpush1.msra.mxu0 %v1124
        %1180 = vmatprep.subr.mxu0 0.0
        %1181 = vmatpush1.msra.mxu0 %v1123
        %1182 = vmatprep.subr.mxu0 0.0
        %1183 = vmatpush1.msra.mxu0 %v1122
        %1184 = vmatprep.subr.mxu0 0.0
        %1185 = vmatpush1.msra.mxu0 %v1121
        %1186 = vmatprep.subr.mxu0 0.0
        %1187 = vmatpush1.msra.mxu0 %v1120
        %1188 = vmatprep.subr.mxu0 0.0
        %1189 = vmatpush1.msra.mxu0 %v1119
        %1190 = vmatprep.subr.mxu0 0.0
        %1191 = vmatpush1.msra.mxu0 %v1118
        %1192 = vmatprep.subr.mxu0 0.0
        %1193 = vmatpush1.msra.mxu0 %v1117
        %1194 = vmatprep.subr.mxu0 0.0
        %1195 = vmatpush1.msra.mxu0 %v1116
        %1196 = vmatprep.subr.mxu0 0.0
        %1197 = vmatpush2.msra.mxu0 0.0
        %1198 = vmatprep.subr.mxu0 0.0
        %1199 = vmatpush2.msra.mxu0 0.0
        %1200 = vmatprep.subr.mxu0 0.0
        %1201 = vmatpush2.msra.mxu0 0.0
        %1202 = vmatprep.subr.mxu0 0.0
        %1203 = vmatpush2.msra.mxu0 0.0
        %1204 = vmatprep.subr.mxu0 0.0
        %1205 = vmatpush2.msra.mxu0 0.0
        %1206 = vmatprep.subr.mxu0 0.0
        %1207 = vmatpush2.msra.mxu0 0.0
        %1208 = vmatprep.subr.mxu0 0.0
        %1209 = vmatpush2.msra.mxu0 0.0
        %1210 = vmatprep.subr.mxu0 0.0
        %1211 = vmatpush2.msra.mxu0 0.0
        %1212 = vmatprep.subr.mxu0 0.0
        %1213 = vmatpush2.msra.mxu0 0.0
        %1214 = vmatprep.subr.mxu0 0.0
        %1215 = vmatpush2.msra.mxu0 0.0
        %1216 = vmatprep.subr.mxu0 0.0
        %1217 = vmatpush2.msra.mxu0 0.0
        %1218 = vmatprep.subr.mxu0 0.0
        %1219 = vmatpush2.msra.mxu0 0.0
        %1220 = vmatprep.subr.mxu0 0.0
        %1221 = vmatpush2.msra.mxu0 0.0
        %1222 = vmatprep.subr.mxu0 0.0
        %1223 = vmatpush2.msra.mxu0 0.0
        %1224 = vmatprep.subr.mxu0 0.0
        %1225 = vmatpush2.msra.mxu0 0.0
        %1226 = vmatprep.subr.mxu0 0.0
        %1227 = vmatpush2.msra.mxu0 0.0
        %1228 = vmatprep.mubr.f32.mxu0 0.0
        %1229 = vmatmul.mubr.f32.gmra.mxu0 %v1153
        %v1230 = vpop.f32.mrf.mxu0
        %v1231 = vadd.f32 %v1135, %v1230
        %v1232 = vpop.f32.mrf.mxu0
        %1233 = vmatprep.mubr.f32.mxu0 0.0
        %1234 = vmatmul.mubr.f32.gmra.mxu0 %v1156
        %v1235 = vpop.f32.mrf.mxu0
        %v1236 = vadd.f32 %v1140, %v1235
        %v1237 = vpop.f32.mrf.mxu0
        %1238 = vmatprep.mubr.f32.mxu0 0.0
        %1239 = vmatmul.mubr.f32.gmra.mxu0 %v1159
        %v1240 = vpop.f32.mrf.mxu0
        %v1241 = vadd.f32 %v1145, %v1240
        %v1242 = vpop.f32.mrf.mxu0
        %1243 = vmatprep.mubr.f32.mxu0 0.0
        %1244 = vmatmul.mubr.f32.gmra.mxu0 %v1162
        %v1245 = vpop.f32.mrf.mxu0
        %v1246 = vadd.f32 %v1150, %v1245
        %v1247 = vpop.f32.mrf.mxu0
        %1248 = vdwg.mxu0
        %vm1249 = vcmp.gt.f32.partialorder %v1231, 0.0
        %vm1250 = vcmp.gt.f32.partialorder %v1236, 0.0
        %vm1251 = vcmp.gt.f32.partialorder %v1241, 0.0
        %vm1252 = vcmp.gt.f32.partialorder %v1246, 0.0
        %v1253 = vmul.f32 %v1231, 1.442695
        %v1254 = vpow.pop %v1253
        %v1255 = vmul.f32 %v1236, 1.442695
        %v1256 = vpow.pop %v1255
        %v1257 = vmul.f32 %v1241, 1.442695
        %v1258 = vpow.pop %v1257
        %v1259 = vmul.f32 %v1246, 1.442695
        %v1260 = vpow.pop %v1259
        %v1261 = vsub.f32 %v1254, 1.0
        %v1262 = vsub.f32 %v1256, 1.0
        %v1263 = vsub.f32 %v1258, 1.0
        %v1264 = vsub.f32 %v1260, 1.0
        %v1265 = vmul.f32 %v1261, 1.6732632
        %v1266 = vmul.f32 %v1262, 1.6732632
        %v1267 = vmul.f32 %v1263, 1.6732632
        %v1268 = vmul.f32 %v1264, 1.6732632
        %v1269 = vsel %vm1249, %v1231, %v1265
        %v1270 = vsel %vm1250, %v1236, %v1266
        %v1271 = vsel %vm1251, %v1241, %v1267
        %v1272 = vsel %vm1252, %v1246, %v1268
        %v1273 = vmul.f32 %v1269, 1.050701
        %v1274 = vmul.f32 %v1270, 1.050701
        %v1275 = vmul.f32 %v1271, 1.050701
        %v1276 = vmul.f32 %v1272, 1.050701
        %1281 = vrot.lane.b32.xlu0 %v1273, 1
        %v1282 = vpop.permute.xlu0 %1281
        %1283 = vrot.lane.b32.xlu0 %v1274, 1
        %v1284 = vpop.permute.xlu0 %1283
        %1285 = vrot.lane.b32.xlu0 %v1275, 1
        %v1286 = vpop.permute.xlu0 %1285
        %1287 = vrot.lane.b32.xlu0 %v1276, 1
        %v1288 = vpop.permute.xlu0 %1287
        %v1293 = vmul.f32 %v1282, %v641
        %v1294 = vmul.f32 %v1284, %v641
        %v1295 = vmul.f32 %v1286, %v641
        %v1296 = vmul.f32 %v1288, %v641
        %1297 = vst [vmem:[#allocation2] sm:$0xff] %v1293
        %1298 = vst [vmem:[#allocation2 + $0x8] sm:$0xff] %v1294
        %1299 = vst [vmem:[#allocation2 + $0x10] sm:$0xff] %v1295
        %1300 = vst [vmem:[#allocation2 + $0x18] sm:$0xff] %v1296
        %1301 = vst [vmem:[#allocation2 + $0x20] sm:$0xff] %v1273
        %1302 = vst [vmem:[#allocation2 + $0x28] sm:$0xff] %v1274
        %1303 = vst [vmem:[#allocation2 + $0x30] sm:$0xff] %v1275
        %1304 = vst [vmem:[#allocation2 + $0x38] sm:$0xff] %v1276
        %1305 = vrot.lane.b32.xlu0 %v1273, 127
        %v1306 = vpop.permute.xlu0 %1305
        %1307 = vrot.lane.b32.xlu0 %v1274, 127
        %v1308 = vpop.permute.xlu0 %1307
        %1309 = vrot.lane.b32.xlu0 %v1275, 127
        %v1310 = vpop.permute.xlu0 %1309
        %1311 = vrot.lane.b32.xlu0 %v1276, 127
        %v1312 = vpop.permute.xlu0 %1311
        %v1317 = vmul.f32 %v1306, %v671
        %v1318 = vmul.f32 %v1308, %v671
        %v1319 = vmul.f32 %v1310, %v671
        %v1320 = vmul.f32 %v1312, %v671
        %1321 = vst [vmem:[#allocation2 + $0x40] sm:$0xff] %v1317
        %1322 = vst [vmem:[#allocation2 + $0x48] sm:$0xff] %v1318
        %1323 = vst [vmem:[#allocation2 + $0x50] sm:$0xff] %v1319
        %1324 = vst [vmem:[#allocation2 + $0x58] sm:$0xff] %v1320
        %v1325 = vld [vmem:[%s11] sm:$0xff]
        %v1326 = vld [vmem:[%s11 + $0x8] sm:$0xff]
        %v1327 = vld [vmem:[%s11 + $0x10] sm:$0xff]
        %v1328 = vld [vmem:[%s11 + $0x18] sm:$0xff]
        %v1329 = vld [vmem:[#allocation2] sm:$0xff]
        %v1330 = vld [vmem:[#allocation2 + $0x8] sm:$0xff]
        %v1331 = vld [vmem:[#allocation2 + $0x10] sm:$0xff]
        %v1332 = vld [vmem:[#allocation2 + $0x18] sm:$0xff]
        %v1333 = vld [vmem:[#allocation2 + $0x20] sm:$0xff]
        %v1334 = vld [vmem:[#allocation2 + $0x28] sm:$0xff]
        %v1335 = vld [vmem:[#allocation2 + $0x30] sm:$0xff]
        %v1336 = vld [vmem:[#allocation2 + $0x38] sm:$0xff]
        %v1337 = vld [vmem:[#allocation2 + $0x40] sm:$0xff]
        %v1338 = vld [vmem:[#allocation2 + $0x48] sm:$0xff]
        %v1339 = vld [vmem:[#allocation2 + $0x50] sm:$0xff]
        %v1340 = vld [vmem:[#allocation2 + $0x58] sm:$0xff]
        %v1341 = vld [vmem:[%s12] sm:$0xff]
        %v1342 = vld [vmem:[%s12 + $0x8] sm:$0xff]
        %v1343 = vld [vmem:[%s12 + $0x10] sm:$0xff]
        %v1344 = vld [vmem:[%s12 + $0x18] sm:$0xff]
        %1346 = vset.pattern.permute.xlu0 0
        %1347 = vperm.xlu0 %1346, %v1341
        %v1348 = vpop.permute.xlu0 %1347
        %1351 = vset.pattern.permute.xlu0 0
        %1352 = vperm.xlu0 %1351, %v1342
        %v1353 = vpop.permute.xlu0 %1352
        %1356 = vset.pattern.permute.xlu0 0
        %1357 = vperm.xlu0 %1356, %v1343
        %v1358 = vpop.permute.xlu0 %1357
        %1361 = vset.pattern.permute.xlu0 0
        %1362 = vperm.xlu0 %1361, %v1344
        %v1363 = vpop.permute.xlu0 %1362
        %v1366 = vsel %vm721, %v1325, 0
        %v1369 = vsel %vm721, %v1326, 0
        %v1372 = vsel %vm721, %v1327, 0
        %v1375 = vsel %vm721, %v1328, 0
        %1377 = vmatprep.subr.mxu0 0.0
        %1378 = vmatpush1.msra.mxu0 0.0
        %1379 = vmatprep.subr.mxu0 0.0
        %1380 = vmatpush1.msra.mxu0 0.0
        %1381 = vmatprep.subr.mxu0 0.0
        %1382 = vmatpush1.msra.mxu0 0.0
        %1383 = vmatprep.subr.mxu0 0.0
        %1384 = vmatpush1.msra.mxu0 0.0
        %1385 = vmatprep.subr.mxu0 0.0
        %1386 = vmatpush1.msra.mxu0 %v1340
        %1387 = vmatprep.subr.mxu0 0.0
        %1388 = vmatpush1.msra.mxu0 %v1339
        %1389 = vmatprep.subr.mxu0 0.0
        %1390 = vmatpush1.msra.mxu0 %v1338
        %1391 = vmatprep.subr.mxu0 0.0
        %1392 = vmatpush1.msra.mxu0 %v1337
        %1393 = vmatprep.subr.mxu0 0.0
        %1394 = vmatpush1.msra.mxu0 %v1336
        %1395 = vmatprep.subr.mxu0 0.0
        %1396 = vmatpush1.msra.mxu0 %v1335
        %1397 = vmatprep.subr.mxu0 0.0
        %1398 = vmatpush1.msra.mxu0 %v1334
        %1399 = vmatprep.subr.mxu0 0.0
        %1400 = vmatpush1.msra.mxu0 %v1333
        %1401 = vmatprep.subr.mxu0 0.0
        %1402 = vmatpush1.msra.mxu0 %v1332
        %1403 = vmatprep.subr.mxu0 0.0
        %1404 = vmatpush1.msra.mxu0 %v1331
        %1405 = vmatprep.subr.mxu0 0.0
        %1406 = vmatpush1.msra.mxu0 %v1330
        %1407 = vmatprep.subr.mxu0 0.0
        %1408 = vmatpush1.msra.mxu0 %v1329
        %1409 = vmatprep.subr.mxu0 0.0
        %1410 = vmatpush2.msra.mxu0 0.0
        %1411 = vmatprep.subr.mxu0 0.0
        %1412 = vmatpush2.msra.mxu0 0.0
        %1413 = vmatprep.subr.mxu0 0.0
        %1414 = vmatpush2.msra.mxu0 0.0
        %1415 = vmatprep.subr.mxu0 0.0
        %1416 = vmatpush2.msra.mxu0 0.0
        %1417 = vmatprep.subr.mxu0 0.0
        %1418 = vmatpush2.msra.mxu0 0.0
        %1419 = vmatprep.subr.mxu0 0.0
        %1420 = vmatpush2.msra.mxu0 0.0
        %1421 = vmatprep.subr.mxu0 0.0
        %1422 = vmatpush2.msra.mxu0 0.0
        %1423 = vmatprep.subr.mxu0 0.0
        %1424 = vmatpush2.msra.mxu0 0.0
        %1425 = vmatprep.subr.mxu0 0.0
        %1426 = vmatpush2.msra.mxu0 0.0
        %1427 = vmatprep.subr.mxu0 0.0
        %1428 = vmatpush2.msra.mxu0 0.0
        %1429 = vmatprep.subr.mxu0 0.0
        %1430 = vmatpush2.msra.mxu0 0.0
        %1431 = vmatprep.subr.mxu0 0.0
        %1432 = vmatpush2.msra.mxu0 0.0
        %1433 = vmatprep.subr.mxu0 0.0
        %1434 = vmatpush2.msra.mxu0 0.0
        %1435 = vmatprep.subr.mxu0 0.0
        %1436 = vmatpush2.msra.mxu0 0.0
        %1437 = vmatprep.subr.mxu0 0.0
        %1438 = vmatpush2.msra.mxu0 0.0
        %1439 = vmatprep.subr.mxu0 0.0
        %1440 = vmatpush2.msra.mxu0 0.0
        %1441 = vmatprep.mubr.f32.mxu0 0.0
        %1442 = vmatmul.mubr.f32.gmra.mxu0 %v1366
        %v1443 = vpop.f32.mrf.mxu0
        %v1444 = vadd.f32 %v1348, %v1443
        %v1445 = vpop.f32.mrf.mxu0
        %1446 = vmatprep.mubr.f32.mxu0 0.0
        %1447 = vmatmul.mubr.f32.gmra.mxu0 %v1369
        %v1448 = vpop.f32.mrf.mxu0
        %v1449 = vadd.f32 %v1353, %v1448
        %v1450 = vpop.f32.mrf.mxu0
        %1451 = vmatprep.mubr.f32.mxu0 0.0
        %1452 = vmatmul.mubr.f32.gmra.mxu0 %v1372
        %v1453 = vpop.f32.mrf.mxu0
        %v1454 = vadd.f32 %v1358, %v1453
        %v1455 = vpop.f32.mrf.mxu0
        %1456 = vmatprep.mubr.f32.mxu0 0.0
        %1457 = vmatmul.mubr.f32.gmra.mxu0 %v1375
        %v1458 = vpop.f32.mrf.mxu0
        %v1459 = vadd.f32 %v1363, %v1458
        %v1460 = vpop.f32.mrf.mxu0
        %1461 = vdwg.mxu0
        %v1462 = vadd.f32 %v1444, %v1060
        %v1463 = vadd.f32 %v1449, %v1061
        %v1464 = vadd.f32 %v1454, %v1062
        %v1465 = vadd.f32 %v1459, %v1063
        %vm1466 = vcmp.gt.f32.partialorder %v1462, 0.0
        %vm1467 = vcmp.gt.f32.partialorder %v1463, 0.0
        %vm1468 = vcmp.gt.f32.partialorder %v1464, 0.0
        %vm1469 = vcmp.gt.f32.partialorder %v1465, 0.0
        %v1470 = vmul.f32 %v1462, 1.442695
        %v1471 = vpow.pop %v1470
        %v1472 = vmul.f32 %v1463, 1.442695
        %v1473 = vpow.pop %v1472
        %v1474 = vmul.f32 %v1464, 1.442695
        %v1475 = vpow.pop %v1474
        %v1476 = vmul.f32 %v1465, 1.442695
        %v1477 = vpow.pop %v1476
        %v1478 = vsub.f32 %v1471, 1.0
        %v1479 = vsub.f32 %v1473, 1.0
        %v1480 = vsub.f32 %v1475, 1.0
        %v1481 = vsub.f32 %v1477, 1.0
        %v1482 = vmul.f32 %v1478, 1.6732632
        %v1483 = vmul.f32 %v1479, 1.6732632
        %v1484 = vmul.f32 %v1480, 1.6732632
        %v1485 = vmul.f32 %v1481, 1.6732632
        %v1486 = vsel %vm1466, %v1462, %v1482
        %v1487 = vsel %vm1467, %v1463, %v1483
        %v1488 = vsel %vm1468, %v1464, %v1484
        %v1489 = vsel %vm1469, %v1465, %v1485
        %v1490 = vmul.f32 %v1486, 1.050701
        %v1491 = vmul.f32 %v1487, 1.050701
        %v1492 = vmul.f32 %v1488, 1.050701
        %v1493 = vmul.f32 %v1489, 1.050701
        %1498 = vrot.lane.b32.xlu0 %v1490, 1
        %v1499 = vpop.permute.xlu0 %1498
        %1500 = vrot.lane.b32.xlu0 %v1491, 1
        %v1501 = vpop.permute.xlu0 %1500
        %1502 = vrot.lane.b32.xlu0 %v1492, 1
        %v1503 = vpop.permute.xlu0 %1502
        %1504 = vrot.lane.b32.xlu0 %v1493, 1
        %v1505 = vpop.permute.xlu0 %1504
        %v1510 = vmul.f32 %v1499, %v641
        %v1511 = vmul.f32 %v1501, %v641
        %v1512 = vmul.f32 %v1503, %v641
        %v1513 = vmul.f32 %v1505, %v641
        %1514 = vst [vmem:[#allocation2] sm:$0xff] %v1510
        %1515 = vst [vmem:[#allocation2 + $0x8] sm:$0xff] %v1511
        %1516 = vst [vmem:[#allocation2 + $0x10] sm:$0xff] %v1512
        %1517 = vst [vmem:[#allocation2 + $0x18] sm:$0xff] %v1513
        %1518 = vst [vmem:[#allocation2 + $0x20] sm:$0xff] %v1490
        %1519 = vst [vmem:[#allocation2 + $0x28] sm:$0xff] %v1491
        %1520 = vst [vmem:[#allocation2 + $0x30] sm:$0xff] %v1492
        %1521 = vst [vmem:[#allocation2 + $0x38] sm:$0xff] %v1493
        %1522 = vrot.lane.b32.xlu0 %v1490, 127
        %v1523 = vpop.permute.xlu0 %1522
        %1524 = vrot.lane.b32.xlu0 %v1491, 127
        %v1525 = vpop.permute.xlu0 %1524
        %1526 = vrot.lane.b32.xlu0 %v1492, 127
        %v1527 = vpop.permute.xlu0 %1526
        %1528 = vrot.lane.b32.xlu0 %v1493, 127
        %v1529 = vpop.permute.xlu0 %1528
        %v1534 = vmul.f32 %v1523, %v671
        %v1535 = vmul.f32 %v1525, %v671
        %v1536 = vmul.f32 %v1527, %v671
        %v1537 = vmul.f32 %v1529, %v671
        %1538 = vst [vmem:[#allocation2 + $0x40] sm:$0xff] %v1534
        %1539 = vst [vmem:[#allocation2 + $0x48] sm:$0xff] %v1535
        %1540 = vst [vmem:[#allocation2 + $0x50] sm:$0xff] %v1536
        %1541 = vst [vmem:[#allocation2 + $0x58] sm:$0xff] %v1537
        %v1542 = vld [vmem:[%s13] sm:$0x1]
        %v1543 = vld [vmem:[#allocation2] sm:$0xff]
        %v1544 = vld [vmem:[#allocation2 + $0x8] sm:$0xff]
        %v1545 = vld [vmem:[#allocation2 + $0x10] sm:$0xff]
        %v1546 = vld [vmem:[#allocation2 + $0x18] sm:$0xff]
        %v1547 = vld [vmem:[#allocation2 + $0x20] sm:$0xff]
        %v1548 = vld [vmem:[#allocation2 + $0x28] sm:$0xff]
        %v1549 = vld [vmem:[#allocation2 + $0x30] sm:$0xff]
        %v1550 = vld [vmem:[#allocation2 + $0x38] sm:$0xff]
        %v1551 = vld [vmem:[#allocation2 + $0x40] sm:$0xff]
        %v1552 = vld [vmem:[#allocation2 + $0x48] sm:$0xff]
        %v1553 = vld [vmem:[#allocation2 + $0x50] sm:$0xff]
        %v1554 = vld [vmem:[#allocation2 + $0x58] sm:$0xff]
        %v1555 = vld [vmem:[#allocation3] sm:$0x1]
        %1557 = vset.pattern.permute.xlu0 0
        %1558 = vperm.xlu0 %1557, %v1555
        %v1559 = vpop.permute.xlu0 %1558
        %v1561 = vlaneseq
        %v1562 = vshrl.u32 %v1561, 7
        %v1563 = vsub.s32 0, %v1562
        %v1564 = vrot.slane %v1559, %v1563
        %v1566 = vsel %vm721, %v1542, 0
        %1568 = vmatprep.subr.mxu0 0.0
        %1569 = vmatpush1.msra.mxu0 0.0
        %1570 = vmatprep.subr.mxu0 0.0
        %1571 = vmatpush1.msra.mxu0 0.0
        %1572 = vmatprep.subr.mxu0 0.0
        %1573 = vmatpush1.msra.mxu0 0.0
        %1574 = vmatprep.subr.mxu0 0.0
        %1575 = vmatpush1.msra.mxu0 0.0
        %1576 = vmatprep.subr.mxu0 0.0
        %1577 = vmatpush1.msra.mxu0 %v1554
        %1578 = vmatprep.subr.mxu0 0.0
        %1579 = vmatpush1.msra.mxu0 %v1553
        %1580 = vmatprep.subr.mxu0 0.0
        %1581 = vmatpush1.msra.mxu0 %v1552
        %1582 = vmatprep.subr.mxu0 0.0
        %1583 = vmatpush1.msra.mxu0 %v1551
        %1584 = vmatprep.subr.mxu0 0.0
        %1585 = vmatpush1.msra.mxu0 %v1550
        %1586 = vmatprep.subr.mxu0 0.0
        %1587 = vmatpush1.msra.mxu0 %v1549
        %1588 = vmatprep.subr.mxu0 0.0
        %1589 = vmatpush1.msra.mxu0 %v1548
        %1590 = vmatprep.subr.mxu0 0.0
        %1591 = vmatpush1.msra.mxu0 %v1547
        %1592 = vmatprep.subr.mxu0 0.0
        %1593 = vmatpush1.msra.mxu0 %v1546
        %1594 = vmatprep.subr.mxu0 0.0
        %1595 = vmatpush1.msra.mxu0 %v1545
        %1596 = vmatprep.subr.mxu0 0.0
        %1597 = vmatpush1.msra.mxu0 %v1544
        %1598 = vmatprep.subr.mxu0 0.0
        %1599 = vmatpush1.msra.mxu0 %v1543
        %1600 = vmatprep.subr.mxu0 0.0
        %1601 = vmatpush2.msra.mxu0 0.0
        %1602 = vmatprep.subr.mxu0 0.0
        %1603 = vmatpush2.msra.mxu0 0.0
        %1604 = vmatprep.subr.mxu0 0.0
        %1605 = vmatpush2.msra.mxu0 0.0
        %1606 = vmatprep.subr.mxu0 0.0
        %1607 = vmatpush2.msra.mxu0 0.0
        %1608 = vmatprep.subr.mxu0 0.0
        %1609 = vmatpush2.msra.mxu0 0.0
        %1610 = vmatprep.subr.mxu0 0.0
        %1611 = vmatpush2.msra.mxu0 0.0
        %1612 = vmatprep.subr.mxu0 0.0
        %1613 = vmatpush2.msra.mxu0 0.0
        %1614 = vmatprep.subr.mxu0 0.0
        %1615 = vmatpush2.msra.mxu0 0.0
        %1616 = vmatprep.subr.mxu0 0.0
        %1617 = vmatpush2.msra.mxu0 0.0
        %1618 = vmatprep.subr.mxu0 0.0
        %1619 = vmatpush2.msra.mxu0 0.0
        %1620 = vmatprep.subr.mxu0 0.0
        %1621 = vmatpush2.msra.mxu0 0.0
        %1622 = vmatprep.subr.mxu0 0.0
        %1623 = vmatpush2.msra.mxu0 0.0
        %1624 = vmatprep.subr.mxu0 0.0
        %1625 = vmatpush2.msra.mxu0 0.0
        %1626 = vmatprep.subr.mxu0 0.0
        %1627 = vmatpush2.msra.mxu0 0.0
        %1628 = vmatprep.subr.mxu0 0.0
        %1629 = vmatpush2.msra.mxu0 0.0
        %1630 = vmatprep.subr.mxu0 0.0
        %1631 = vmatpush2.msra.mxu0 0.0
        %1632 = vmatprep.mubr.f32.mxu0 0.0
        %1633 = vmatmul.mubr.f32.gmra.mxu0 %v1566
        %v1634 = vpop.f32.mrf.mxu0
        %v1635 = vadd.f32 %v1564, %v1634
        %v1636 = vpop.f32.mrf.mxu0
        %1637 = vdwg.mxu0
        %v1638 = vtanh.pop %v1635
        %1639 = vst [vmem:[%s484] sm:$0x1] %v1638
        %s1640 = sand.u32 %s359, 1
        %s1641 = scalar_lea.sflag [#allocation5], %s1640
        %s1642 = sand.u32 %s359, 1
        %s1643 = scalar_lea.vmem [#allocation4], %s1642
        // Predicated region
        $region81: #{tpu_custom_call.1} parent=79 // pred_check
          %p1644 = pneg %p369
        $region82: #{tpu_custom_call.1} parent=79 // pred_check_branch
          %1646 = sbr.rel (%p1644) target = $region84
        $region83: #{tpu_custom_call.1} parent=79 // pred_region
          %s1648 = ssub.s32 16, 16
          %1649 = vsyncadd %s1641, %s1648
          %s1650 = smul.addr %s31, 16
          %s1651 = scalar_lea.hbm %s15, %s1650
          %s1653 = sshll.u32 %s1643, 4
          %s1654 = int_to_ptr.vmem [resolvable:$true] %s1653
          %1656 = dma.vmem_to_hbm [thread:$0]  %s1654, 16, %s1651, %s1641
        $region84: #{tpu_custom_call.1} parent=79 // pred_fallthru
          _
      $region80: #{tpu_custom_call.1} parent=5 // pred_fallthru
        _
      %p1657 = scmp.le.s32.totalorder 2, %s26
      // Predicated region
      $region85: #{tpu_custom_call.1} parent=5 // pred_check
        %p1658 = pneg %p1657
      $region86: #{tpu_custom_call.1} parent=5 // pred_check_branch
        %1660 = sbr.rel (%p1658) target = $region88
      $region87: #{tpu_custom_call.1} parent=5 // pred_region
        %s1661 = ssub.s32 %s26, 2
        // Predicated region
        $region89: #{tpu_custom_call.1} parent=87 // pred_check
          %p1662 = pneg %p375
        $region90: #{tpu_custom_call.1} parent=87 // pred_check_branch
          %1664 = sbr.rel (%p1662) target = $region92
        $region91: #{tpu_custom_call.1} parent=87 // pred_region
          %s1665 = sand.u32 %s360, 1
          %s1666 = scalar_lea.sflag [#allocation5], %s1665
          %s1667 = sand.u32 %s360, 1
          %s1668 = scalar_lea.vmem [#allocation4], %s1667
          %1669 = dma.done %s1666, 16
        $region92: #{tpu_custom_call.1} parent=87 // pred_fallthru
          _
      $region88: #{tpu_custom_call.1} parent=5 // pred_fallthru
        _
    $region6: #{tpu_custom_call.1} parent=1 // loop_footer
      %s30 = sadd.s32 1, %s26
    $region7: #{tpu_custom_call.1} parent=1 // loop_footer_branch
      %25 = sbr.rel target = $region3
    $region8: #{tpu_custom_call.1} parent=1 // loop_exit
      _
    %1670 = vsyncpa [#allocation5], 1
    %s1671 = scalar_lea.sflag [#allocation5], 1
    %1672 = vsyncpa %s1671, 1

</llo_original>
